<compile_context>
chip_gen: v6e
topology: v6e:2x2x1
jax: 0.10.0
libtpu: 0.0.40
codegen_flags: <defaults>
</compile_context>

<pallas_src>
import math
from functools import partial

import jax
import jax.numpy as jnp
from jax.experimental import pallas as pl
from jax.experimental.pallas import tpu as pltpu


# ----------------------------- in-kernel helpers -----------------------------

def _layernorm_f32(x, w, b, eps=1e-5):
    # x: (S, D) f32; w, b: (D,) f32
    mu = jnp.mean(x, axis=-1, keepdims=True)
    var = jnp.mean((x - mu) ** 2, axis=-1, keepdims=True)
    return (x - mu) * jax.lax.rsqrt(var + eps) * w + b


def _new_gelu(x):
    # NewGELUActivation (tanh approximation); x*x*x instead of pow(x, 3.0)
    c = math.sqrt(2.0 / math.pi)
    return 0.5 * x * (1.0 + jnp.tanh(c * (x + 0.044715 * (x * x * x))))


# ------------------------------- block kernel --------------------------------

def block_kernel(x_ref, qkv_w_ref, qkv_b_ref, ow_ref, ob_ref,
                 ln1_w_ref, ln1_b_ref, ln2_w_ref, ln2_b_ref,
                 w1_ref, b1_ref, w2_ref, b2_ref,
                 out_ref, *, num_heads, head_size, seq_len):
    cdt = qkv_w_ref.dtype                    # matmul-input (parameter) dtype
    exact = jnp.dtype(cdt) == jnp.dtype(jnp.float32)
    x = x_ref[0].astype(jnp.float32)         # (Sp, D) residual stream in f32
    Sp = x.shape[0]
    H, Dh = num_heads, head_size
    D = H * Dh

    # ---------------- attention branch: x + MHA(LN1(x)) ----------------
    h = _layernorm_f32(x, ln1_w_ref[0].astype(jnp.float32),
                       ln1_b_ref[0].astype(jnp.float32))

    qkv = jnp.dot(h.astype(cdt), qkv_w_ref[...],
                  preferred_element_type=jnp.float32)
    qkv = qkv + qkv_b_ref[0].astype(jnp.float32)          # (Sp, 3D) f32

    def split_heads(t):                                    # (Sp, D) -> (H, Sp, Dh)
        return jnp.transpose(t.reshape(Sp, H, Dh), (1, 0, 2))

    scale = 1.0 / math.sqrt(head_size)
    q = split_heads(qkv[:, 0 * D:1 * D] * scale)           # scale folded into q
    k = split_heads(qkv[:, 1 * D:2 * D])
    v = split_heads(qkv[:, 2 * D:3 * D])

    # QK^T in the compute dtype (bf16 MXU rate in bf16 mode), f32 accumulation.
    scores = jnp.einsum('hqd,hkd->hqk', q.astype(cdt), k.astype(cdt),
                        preferred_element_type=jnp.float32)  # (H, Sp, Sp)

    if seq_len < Sp:
        # mask padded key positions so they contribute exactly 0 probability;
        # broadcast a (1,1,Sp) iota instead of a full (H,Sp,Sp) int32 temporary
        key_ids = jax.lax.broadcasted_iota(jnp.int32, (1, 1, Sp), 2)
        scores = jnp.where(key_ids < seq_len, scores, -1e30)

    m = jnp.max(scores, axis=-1, keepdims=True)
    e = jnp.exp(scores - m)
    denom = jnp.sum(e, axis=-1, keepdims=True)
    if exact:
        probs = e / denom                                   # exact in f32 mode
    else:
        probs = e * pl.reciprocal(denom, approx=True)       # EUP slot, bf16 mode
    # attn_dropout: identity (eval mode)

    ctx = jnp.einsum('hqk,hkd->hqd', probs.astype(cdt), v.astype(cdt),
                     preferred_element_type=jnp.float32)    # (H, Sp, Dh)
    # concat over heads -> (Sp, D), then ONE full-K output projection matmul
    ctx = jnp.transpose(ctx, (1, 0, 2)).reshape(Sp, D)
    attn_out = jnp.dot(ctx.astype(cdt), ow_ref[...],
                       preferred_element_type=jnp.float32)
    attn_out = attn_out + ob_ref[0].astype(jnp.float32)
    # output_dropout: identity (eval mode)
    x = x + attn_out

    # ---------------- MLP branch: x + MLP(LN2(x)) ----------------
    h2 = _layernorm_f32(x, ln2_w_ref[0].astype(jnp.float32),
                        ln2_b_ref[0].astype(jnp.float32))
    m1 = jnp.dot(h2.astype(cdt), w1_ref[...],
                 preferred_element_type=jnp.float32) + b1_ref[0].astype(jnp.float32)
    m1 = _new_gelu(m1)
    m2 = jnp.dot(m1.astype(cdt), w2_ref[...],
                 preferred_element_type=jnp.float32) + b2_ref[0].astype(jnp.float32)
    # hidden_dropout: identity (eval mode)
    x = x + m2

    out_ref[0] = x.astype(out_ref.dtype)


# ------------------------------ python wrapper --------------------------------

def _physical_vmem_bytes():
    # generation-aware ceiling (128 MiB v5e/v6e, 64 MiB per-TC on v7x)
    try:
        return int(pltpu.get_tpu_info().vmem_capacity_bytes)
    except Exception:
        return 64 * 1024 * 1024


def _vmem_limit_bytes(Sp, D, I, H, param_bytes, act_bytes):
    # weights/biases single-buffered (pl.Buffered(1) on constant-index specs)
    weights = (3 * D * D + D * D + 2 * D * I + 3 * D + 6 * D + I) * param_bytes
    # x / out blocks double-buffered by the default pipeline
    io_blocks = 2 * 2 * Sp * D * act_bytes
    # f32 intermediates (qkv, scores+probs, MLP hidden, residual/ctx temps)
    f32_scratch = (Sp * 3 * D + 2 * H * Sp * Sp + Sp * I + 6 * Sp * D) * 4
    need = weights + io_blocks + f32_scratch + (4 << 20)    # compiler headroom
    cap = int(0.9 * _physical_vmem_bytes())
    return int(min(max(need, 32 * 1024 * 1024), cap))


def _weight_spec(shape):
    # Constant-index weights/biases: request single buffering so the pipeline
    # does not hold two copies of resident weights across the batch grid.
    idx = lambda b, _n=len(shape): (0,) * _n
    try:
        return pl.BlockSpec(shape, idx, pipeline_mode=pl.Buffered(1))
    except Exception:
        return pl.BlockSpec(shape, idx)


def run_block(x, p, num_heads, seq_len):
    B, Sp, D = x.shape
    head_size = D // num_heads
    I = p["w1"].shape[1]
    param_bytes = jnp.dtype(p["qkv_w"].dtype).itemsize
    act_bytes = jnp.dtype(x.dtype).itemsize

    in_specs = [
        pl.BlockSpec((1, Sp, D), lambda b: (b, 0, 0)),   # x
        _weight_spec((D, 3 * D)), _weight_spec((1, 3 * D)),   # qkv_w, qkv_b
        _weight_spec((D, D)), _weight_spec((1, D)),           # output proj w, b
        _weight_spec((1, D)), _weight_spec((1, D)),           # ln1 w, b
        _weight_spec((1, D)), _weight_spec((1, D)),           # ln2 w, b
        _weight_spec((D, I)), _weight_spec((1, I)),           # mlp dense1 w, b
        _weight_spec((I, D)), _weight_spec((1, D)),           # mlp dense2 w, b
    ]

    return pl.pallas_call(
        partial(block_kernel, num_heads=num_heads, head_size=head_size,
                seq_len=seq_len),
        out_shape=jax.ShapeDtypeStruct((B, Sp, D), x.dtype),
        grid=(B,),
        in_specs=in_specs,
        out_specs=pl.BlockSpec((1, Sp, D), lambda b: (b, 0, 0)),
        compiler_params=pltpu.CompilerParams(
            dimension_semantics=("parallel",),
            vmem_limit_bytes=_vmem_limit_bytes(Sp, D, I, num_heads,
                                               param_bytes, act_bytes)),
    )(x, p["qkv_w"], p["qkv_b"], p["ow"], p["ob"],
      p["ln1_w"], p["ln1_b"], p["ln2_w"], p["ln2_b"],
      p["w1"], p["b1"], p["w2"], p["b2"])


def encoder_forward(x, layer_params, num_heads):
    # Encoder.forward with output_attentions=False: sequential blocks.
    B, S, D = x.shape
    sublane = 16 if x.dtype == jnp.bfloat16 else 8
    Sp = ((S + sublane - 1) // sublane) * sublane
    if Sp != S:
        x = jnp.pad(x, ((0, 0), (0, Sp - S), (0, 0)))
    for p in layer_params:
        x = run_block(x, p, num_heads, seq_len=S)
    if Sp != S:
        x = x[:, :S, :]
    return x


# ------------------------------ reference (JAX) -------------------------------

def _ref_block(x, p, num_heads):
    D = x.shape[-1]
    Dh = D // num_heads

    def ln(v, w, b):
        mu = jnp.mean(v, -1, keepdims=True)
        var = jnp.mean((v - mu) ** 2, -1, keepdims=True)
        return (v - mu) / jnp.sqrt(var + 1e-5) * w[0] + b[0]

    h = ln(x, p["ln1_w"], p["ln1_b"])
    qkv = h @ p["qkv_w"] + p["qkv_b"][0]
    q, k, v = jnp.split(qkv, 3, axis=-1)
    B, S, _ = q.shape
    q = q.reshape(B, S, num_heads, Dh).transpose(0, 2, 1, 3)
    k = k.reshape(B, S, num_heads, Dh).transpose(0, 2, 1, 3)
    v = v.reshape(B, S, num_heads, Dh).transpose(0, 2, 1, 3)
    s = jnp.einsum("bhqd,bhkd->bhqk", q, k) / math.sqrt(Dh)
    pr = jax.nn.softmax(s, axis=-1)
    ao = jnp.einsum("bhqk,bhkd->bhqd", pr, v).transpose(0, 2, 1, 3).reshape(B, S, D)
    ao = ao @ p["ow"] + p["ob"][0]
    x = x + ao
    h2 = ln(x, p["ln2_w"], p["ln2_b"])
    c = math.sqrt(2.0 / math.pi)
    m = h2 @ p["w1"] + p["b1"][0]
    m = 0.5 * m * (1.0 + jnp.tanh(c * (m + 0.044715 * m ** 3)))
    m = m @ p["w2"] + p["b2"][0]
    return x + m


# ------------------------------------ main ------------------------------------

if __name__ == "__main__":
    # Small ViT-ish config; S=10 deliberately not sublane-aligned to exercise
    # the host-side padding + in-kernel key masking path.
    B, S, D = 2, 10, 32
    num_heads = 4
    intermediate = 4 * D
    num_layers = 2

    key = jax.random.PRNGKey(0)

    def make_layer(k):
        ks = jax.random.split(k, 8)
        s = 0.02
        return {
            # Linear weights are stored (in, out) so the kernel computes x @ W + b,
            # equivalent to PyTorch's x @ weight.T + bias.
            "qkv_w": s * jax.random.normal(ks[0], (D, 3 * D), jnp.float32),
            "qkv_b": s * jax.random.normal(ks[1], (1, 3 * D), jnp.float32),
            "ow":    s * jax.random.normal(ks[2], (D, D), jnp.float32),
            "ob":    s * jax.random.normal(ks[3], (1, D), jnp.float32),
            "ln1_w": jnp.ones((1, D), jnp.float32),
            "ln1_b": jnp.zeros((1, D), jnp.float32),
            "ln2_w": jnp.ones((1, D), jnp.float32),
            "ln2_b": jnp.zeros((1, D), jnp.float32),
            "w1":    s * jax.random.normal(ks[4], (D, intermediate), jnp.float32),
            "b1":    s * jax.random.normal(ks[5], (1, intermediate), jnp.float32),
            "w2":    s * jax.random.normal(ks[6], (intermediate, D), jnp.float32),
            "b2":    s * jax.random.normal(ks[7], (1, D), jnp.float32),
        }

    key, *lkeys = jax.random.split(key, num_layers + 1)
    layer_params = [make_layer(k) for k in lkeys]

    x = jax.random.normal(key, (B, S, D), jnp.float32)

    # f32 run + strict correctness check against a pure-JAX reference
    out = jax.block_until_ready(encoder_forward(x, layer_params, num_heads))

    ref = x
    for p in layer_params:
        ref = _ref_block(ref, p, num_heads)
    assert out.shape == (B, S, D)
    assert jnp.allclose(out, ref, rtol=1e-3, atol=1e-3), \
        f"max abs err {jnp.max(jnp.abs(out - ref))}"

    # bf16 weights/activations smoke run (f32 accumulation & layernorm kept
    # inside the kernel) -- loose tolerance against the f32 reference.
    bf16 = lambda tree: jax.tree_util.tree_map(
        lambda a: a.astype(jnp.bfloat16), tree)
    out_bf16 = jax.block_until_ready(
        encoder_forward(x.astype(jnp.bfloat16),
                        [bf16(p) for p in layer_params], num_heads))
    out_bf16_f32 = out_bf16.astype(jnp.float32)
    assert out_bf16.shape == (B, S, D)
    assert bool(jnp.all(jnp.isfinite(out_bf16_f32)))
    assert jnp.allclose(out_bf16_f32, ref, rtol=1e-1, atol=1e-1), \
        f"bf16 max abs err {jnp.max(jnp.abs(out_bf16_f32 - ref))}"

    print("KERNEL_OK")
</pallas_src>

<mosaic_0001>
module attributes {stable_mosaic.version = 11 : i64} {
  func.func @block_kernel(%arg0: i32, %arg1: memref<1x16x32xf32, #tpu.memory_space<vmem>>, %arg2: memref<32x96xf32, #tpu.memory_space<vmem>>, %arg3: memref<1x96xf32, #tpu.memory_space<vmem>>, %arg4: memref<32x32xf32, #tpu.memory_space<vmem>>, %arg5: memref<1x32xf32, #tpu.memory_space<vmem>>, %arg6: memref<1x32xf32, #tpu.memory_space<vmem>>, %arg7: memref<1x32xf32, #tpu.memory_space<vmem>>, %arg8: memref<1x32xf32, #tpu.memory_space<vmem>>, %arg9: memref<1x32xf32, #tpu.memory_space<vmem>>, %arg10: memref<32x128xf32, #tpu.memory_space<vmem>>, %arg11: memref<1x128xf32, #tpu.memory_space<vmem>>, %arg12: memref<128x32xf32, #tpu.memory_space<vmem>>, %arg13: memref<1x32xf32, #tpu.memory_space<vmem>>, %arg14: memref<1x16x32xf32, #tpu.memory_space<vmem>>) attributes {dimension_semantics = [#tpu.dimension_semantics<parallel>], iteration_bounds = array<i64: 2>, scalar_prefetch = 0 : i64, scratch_operands = 0 : i64, tpu.core_type = #tpu.core_type<tc>, window_params = [{transform_indices = @transform_0, window_bounds = array<i64: 1, 16, 32>}, {pipeline_mode = #tpu.pipeline_mode<synchronous>, transform_indices = @transform_1, window_bounds = array<i64: 32, 96>}, {pipeline_mode = #tpu.pipeline_mode<synchronous>, transform_indices = @transform_2, window_bounds = array<i64: 1, 96>}, {pipeline_mode = #tpu.pipeline_mode<synchronous>, transform_indices = @transform_3, window_bounds = array<i64: 32, 32>}, {pipeline_mode = #tpu.pipeline_mode<synchronous>, transform_indices = @transform_4, window_bounds = array<i64: 1, 32>}, {pipeline_mode = #tpu.pipeline_mode<synchronous>, transform_indices = @transform_5, window_bounds = array<i64: 1, 32>}, {pipeline_mode = #tpu.pipeline_mode<synchronous>, transform_indices = @transform_6, window_bounds = array<i64: 1, 32>}, {pipeline_mode = #tpu.pipeline_mode<synchronous>, transform_indices = @transform_7, window_bounds = array<i64: 1, 32>}, {pipeline_mode = #tpu.pipeline_mode<synchronous>, transform_indices = @transform_8, window_bounds = array<i64: 1, 32>}, {pipeline_mode = #tpu.pipeline_mode<synchronous>, transform_indices = @transform_9, window_bounds = array<i64: 32, 128>}, {pipeline_mode = #tpu.pipeline_mode<synchronous>, transform_indices = @transform_10, window_bounds = array<i64: 1, 128>}, {pipeline_mode = #tpu.pipeline_mode<synchronous>, transform_indices = @transform_11, window_bounds = array<i64: 128, 32>}, {pipeline_mode = #tpu.pipeline_mode<synchronous>, transform_indices = @transform_12, window_bounds = array<i64: 1, 32>}, {transform_indices = @transform_13, window_bounds = array<i64: 1, 16, 32>}]} {
    %c0 = arith.constant 0 : index
    %c0_0 = arith.constant 0 : index
    %c0_1 = arith.constant 0 : index
    %0 = vector.load %arg1[%c0, %c0_0, %c0_1] : memref<1x16x32xf32, #tpu.memory_space<vmem>>, vector<1x16x32xf32>
    %1 = vector.shape_cast %0 : vector<1x16x32xf32> to vector<16x32xf32>
    %c0_2 = arith.constant 0 : index
    %c0_3 = arith.constant 0 : index
    %2 = vector.load %arg6[%c0_2, %c0_3] : memref<1x32xf32, #tpu.memory_space<vmem>>, vector<1x32xf32>
    %3 = vector.shape_cast %2 : vector<1x32xf32> to vector<32xf32>
    %c0_4 = arith.constant 0 : index
    %c0_5 = arith.constant 0 : index
    %4 = vector.load %arg7[%c0_4, %c0_5] : memref<1x32xf32, #tpu.memory_space<vmem>>, vector<1x32xf32>
    %5 = vector.shape_cast %4 : vector<1x32xf32> to vector<32xf32>
    %cst = arith.constant dense<0.000000e+00> : vector<16xf32>
    %6 = vector.multi_reduction <add>, %1, %cst [1] : vector<16x32xf32> to vector<16xf32>
    %7 = vector.shape_cast %6 : vector<16xf32> to vector<16x1xf32>
    %cst_6 = arith.constant 3.200000e+01 : f32
    %8 = vector.broadcast %cst_6 : f32 to vector<16x1xf32>
    %9 = arith.divf %7, %8 : vector<16x1xf32>
    %10 = vector.broadcast %9 : vector<16x1xf32> to vector<16x32xf32>
    %11 = arith.subf %1, %10 : vector<16x32xf32>
    %12 = arith.mulf %11, %11 : vector<16x32xf32>
    %cst_7 = arith.constant dense<0.000000e+00> : vector<16xf32>
    %13 = vector.multi_reduction <add>, %12, %cst_7 [1] : vector<16x32xf32> to vector<16xf32>
    %14 = vector.shape_cast %13 : vector<16xf32> to vector<16x1xf32>
    %cst_8 = arith.constant 3.200000e+01 : f32
    %15 = vector.broadcast %cst_8 : f32 to vector<16x1xf32>
    %16 = arith.divf %14, %15 : vector<16x1xf32>
    %17 = vector.broadcast %9 : vector<16x1xf32> to vector<16x32xf32>
    %18 = arith.subf %1, %17 : vector<16x32xf32>
    %cst_9 = arith.constant 9.99999974E-6 : f32
    %19 = vector.broadcast %cst_9 : f32 to vector<16x1xf32>
    %20 = arith.addf %16, %19 : vector<16x1xf32>
    %21 = math.rsqrt %20 : vector<16x1xf32>
    %22 = vector.broadcast %21 : vector<16x1xf32> to vector<16x32xf32>
    %23 = arith.mulf %18, %22 : vector<16x32xf32>
    %24 = vector.shape_cast %3 : vector<32xf32> to vector<1x32xf32>
    %25 = vector.broadcast %24 : vector<1x32xf32> to vector<16x32xf32>
    %26 = arith.mulf %23, %25 : vector<16x32xf32>
    %27 = vector.shape_cast %5 : vector<32xf32> to vector<1x32xf32>
    %28 = vector.broadcast %27 : vector<1x32xf32> to vector<16x32xf32>
    %29 = arith.addf %26, %28 : vector<16x32xf32>
    %c0_10 = arith.constant 0 : index
    %c0_11 = arith.constant 0 : index
    %30 = vector.load %arg2[%c0_10, %c0_11] : memref<32x96xf32, #tpu.memory_space<vmem>>, vector<32x96xf32>
    %cst_12 = arith.constant dense<0.000000e+00> : vector<16x96xf32>
    %31 = tpu.matmul %29, %30, %cst_12 {dimension_numbers = #tpu.dot_dimension_numbers<[1], [0], [0], [1], [0, 0, 1, 1], [], []>} : vector<16x32xf32>, vector<32x96xf32>, vector<16x96xf32> -> vector<16x96xf32>
    %c0_13 = arith.constant 0 : index
    %c0_14 = arith.constant 0 : index
    %32 = vector.load %arg3[%c0_13, %c0_14] : memref<1x96xf32, #tpu.memory_space<vmem>>, vector<1x96xf32>
    %33 = vector.shape_cast %32 : vector<1x96xf32> to vector<96xf32>
    %34 = vector.shape_cast %33 : vector<96xf32> to vector<1x96xf32>
    %35 = vector.broadcast %34 : vector<1x96xf32> to vector<16x96xf32>
    %36 = arith.addf %31, %35 : vector<16x96xf32>
    %37 = vector.extract_strided_slice %36 {offsets = [0, 0], sizes = [16, 32], strides = [1, 1]} : vector<16x96xf32> to vector<16x32xf32>
    %cst_15 = arith.constant 0.353553385 : f32
    %38 = vector.broadcast %cst_15 : f32 to vector<16x32xf32>
    %39 = arith.mulf %37, %38 : vector<16x32xf32>
    %40 = vector.shape_cast %39 : vector<16x32xf32> to vector<16x4x8xf32>
    %41 = tpu.transpose %40, [1, 0, 2] : vector<16x4x8xf32> -> vector<4x16x8xf32>
    %42 = vector.extract_strided_slice %36 {offsets = [0, 32], sizes = [16, 32], strides = [1, 1]} : vector<16x96xf32> to vector<16x32xf32>
    %43 = vector.shape_cast %42 : vector<16x32xf32> to vector<16x4x8xf32>
    %44 = tpu.transpose %43, [1, 0, 2] : vector<16x4x8xf32> -> vector<4x16x8xf32>
    %45 = vector.extract_strided_slice %36 {offsets = [0, 64], sizes = [16, 32], strides = [1, 1]} : vector<16x96xf32> to vector<16x32xf32>
    %46 = vector.shape_cast %45 : vector<16x32xf32> to vector<16x4x8xf32>
    %47 = tpu.transpose %46, [1, 0, 2] : vector<16x4x8xf32> -> vector<4x16x8xf32>
    "tpu.trace_start"() <{level = 10 : i32, message = "hqd,hkd->hqk"}> : () -> ()
    %cst_16 = arith.constant dense<0.000000e+00> : vector<4x16x16xf32>
    %48 = tpu.matmul %41, %44, %cst_16 {dimension_numbers = #tpu.dot_dimension_numbers<[2], [2], [1], [1], [0, 0, 0, 1, 1, 1], [0], [0]>} : vector<4x16x8xf32>, vector<4x16x8xf32>, vector<4x16x16xf32> -> vector<4x16x16xf32>
    "tpu.trace_stop"() : () -> ()
    %49 = tpu.iota {dimensions = array<i32: 2>} : vector<1x1x16xi32>
    %c10_i32 = arith.constant 10 : i32
    %50 = vector.broadcast %c10_i32 : i32 to vector<1x1x16xi32>
    %51 = arith.cmpi slt, %49, %50 : vector<1x1x16xi32>
    %cst_17 = arith.constant -1.000000e+30 : f32
    %52 = vector.shape_cast %51 : vector<1x1x16xi1> to vector<1x1x16xi1>
    %53 = vector.broadcast %52 : vector<1x1x16xi1> to vector<4x16x16xi1>
    %54 = vector.broadcast %cst_17 : f32 to vector<4x16x16xf32>
    %55 = arith.select %53, %48, %54 : vector<4x16x16xi1>, vector<4x16x16xf32>
    %cst_18 = arith.constant dense<0xFF800000> : vector<4x16xf32>
    %56 = vector.multi_reduction <maximumf>, %55, %cst_18 [2] : vector<4x16x16xf32> to vector<4x16xf32>
    %57 = vector.shape_cast %56 : vector<4x16xf32> to vector<4x16x1xf32>
    %58 = vector.broadcast %57 : vector<4x16x1xf32> to vector<4x16x16xf32>
    %59 = arith.subf %55, %58 : vector<4x16x16xf32>
    %60 = math.exp %59 : vector<4x16x16xf32>
    %cst_19 = arith.constant dense<0.000000e+00> : vector<4x16xf32>
    %61 = vector.multi_reduction <add>, %60, %cst_19 [2] : vector<4x16x16xf32> to vector<4x16xf32>
    %62 = vector.shape_cast %61 : vector<4x16xf32> to vector<4x16x1xf32>
    %63 = vector.broadcast %62 : vector<4x16x1xf32> to vector<4x16x16xf32>
    %64 = arith.divf %60, %63 : vector<4x16x16xf32>
    "tpu.trace_start"() <{level = 10 : i32, message = "hqk,hkd->hqd"}> : () -> ()
    %cst_20 = arith.constant dense<0.000000e+00> : vector<4x16x8xf32>
    %65 = tpu.matmul %64, %47, %cst_20 {dimension_numbers = #tpu.dot_dimension_numbers<[2], [1], [1], [2], [0, 0, 0, 1, 1, 2], [0], [0]>} : vector<4x16x16xf32>, vector<4x16x8xf32>, vector<4x16x8xf32> -> vector<4x16x8xf32>
    "tpu.trace_stop"() : () -> ()
    %66 = tpu.transpose %65, [1, 0, 2] : vector<4x16x8xf32> -> vector<16x4x8xf32>
    %67 = vector.shape_cast %66 : vector<16x4x8xf32> to vector<16x32xf32>
    %c0_21 = arith.constant 0 : index
    %c0_22 = arith.constant 0 : index
    %68 = vector.load %arg4[%c0_21, %c0_22] : memref<32x32xf32, #tpu.memory_space<vmem>>, vector<32x32xf32>
    %cst_23 = arith.constant dense<0.000000e+00> : vector<16x32xf32>
    %69 = tpu.matmul %67, %68, %cst_23 {dimension_numbers = #tpu.dot_dimension_numbers<[1], [0], [0], [1], [0, 0, 1, 1], [], []>} : vector<16x32xf32>, vector<32x32xf32>, vector<16x32xf32> -> vector<16x32xf32>
    %c0_24 = arith.constant 0 : index
    %c0_25 = arith.constant 0 : index
    %70 = vector.load %arg5[%c0_24, %c0_25] : memref<1x32xf32, #tpu.memory_space<vmem>>, vector<1x32xf32>
    %71 = vector.shape_cast %70 : vector<1x32xf32> to vector<32xf32>
    %72 = vector.shape_cast %71 : vector<32xf32> to vector<1x32xf32>
    %73 = vector.broadcast %72 : vector<1x32xf32> to vector<16x32xf32>
    %74 = arith.addf %69, %73 : vector<16x32xf32>
    %75 = arith.addf %1, %74 : vector<16x32xf32>
    %c0_26 = arith.constant 0 : index
    %c0_27 = arith.constant 0 : index
    %76 = vector.load %arg8[%c0_26, %c0_27] : memref<1x32xf32, #tpu.memory_space<vmem>>, vector<1x32xf32>
    %77 = vector.shape_cast %76 : vector<1x32xf32> to vector<32xf32>
    %c0_28 = arith.constant 0 : index
    %c0_29 = arith.constant 0 : index
    %78 = vector.load %arg9[%c0_28, %c0_29] : memref<1x32xf32, #tpu.memory_space<vmem>>, vector<1x32xf32>
    %79 = vector.shape_cast %78 : vector<1x32xf32> to vector<32xf32>
    %cst_30 = arith.constant dense<0.000000e+00> : vector<16xf32>
    %80 = vector.multi_reduction <add>, %75, %cst_30 [1] : vector<16x32xf32> to vector<16xf32>
    %81 = vector.shape_cast %80 : vector<16xf32> to vector<16x1xf32>
    %cst_31 = arith.constant 3.200000e+01 : f32
    %82 = vector.broadcast %cst_31 : f32 to vector<16x1xf32>
    %83 = arith.divf %81, %82 : vector<16x1xf32>
    %84 = vector.broadcast %83 : vector<16x1xf32> to vector<16x32xf32>
    %85 = arith.subf %75, %84 : vector<16x32xf32>
    %86 = arith.mulf %85, %85 : vector<16x32xf32>
    %cst_32 = arith.constant dense<0.000000e+00> : vector<16xf32>
    %87 = vector.multi_reduction <add>, %86, %cst_32 [1] : vector<16x32xf32> to vector<16xf32>
    %88 = vector.shape_cast %87 : vector<16xf32> to vector<16x1xf32>
    %cst_33 = arith.constant 3.200000e+01 : f32
    %89 = vector.broadcast %cst_33 : f32 to vector<16x1xf32>
    %90 = arith.divf %88, %89 : vector<16x1xf32>
    %91 = vector.broadcast %83 : vector<16x1xf32> to vector<16x32xf32>
    %92 = arith.subf %75, %91 : vector<16x32xf32>
    %cst_34 = arith.constant 9.99999974E-6 : f32
    %93 = vector.broadcast %cst_34 : f32 to vector<16x1xf32>
    %94 = arith.addf %90, %93 : vector<16x1xf32>
    %95 = math.rsqrt %94 : vector<16x1xf32>
    %96 = vector.broadcast %95 : vector<16x1xf32> to vector<16x32xf32>
    %97 = arith.mulf %92, %96 : vector<16x32xf32>
    %98 = vector.shape_cast %77 : vector<32xf32> to vector<1x32xf32>
    %99 = vector.broadcast %98 : vector<1x32xf32> to vector<16x32xf32>
    %100 = arith.mulf %97, %99 : vector<16x32xf32>
    %101 = vector.shape_cast %79 : vector<32xf32> to vector<1x32xf32>
    %102 = vector.broadcast %101 : vector<1x32xf32> to vector<16x32xf32>
    %103 = arith.addf %100, %102 : vector<16x32xf32>
    %c0_35 = arith.constant 0 : index
    %c0_36 = arith.constant 0 : index
    %104 = vector.load %arg10[%c0_35, %c0_36] : memref<32x128xf32, #tpu.memory_space<vmem>>, vector<32x128xf32>
    %cst_37 = arith.constant dense<0.000000e+00> : vector<16x128xf32>
    %105 = tpu.matmul %103, %104, %cst_37 {dimension_numbers = #tpu.dot_dimension_numbers<[1], [0], [0], [1], [0, 0, 1, 1], [], []>} : vector<16x32xf32>, vector<32x128xf32>, vector<16x128xf32> -> vector<16x128xf32>
    %c0_38 = arith.constant 0 : index
    %c0_39 = arith.constant 0 : index
    %106 = vector.load %arg11[%c0_38, %c0_39] : memref<1x128xf32, #tpu.memory_space<vmem>>, vector<1x128xf32>
    %107 = vector.shape_cast %106 : vector<1x128xf32> to vector<128xf32>
    %108 = vector.shape_cast %107 : vector<128xf32> to vector<1x128xf32>
    %109 = vector.broadcast %108 : vector<1x128xf32> to vector<16x128xf32>
    %110 = arith.addf %105, %109 : vector<16x128xf32>
    %cst_40 = arith.constant 5.000000e-01 : f32
    %111 = vector.broadcast %cst_40 : f32 to vector<16x128xf32>
    %112 = arith.mulf %111, %110 : vector<16x128xf32>
    %113 = arith.mulf %110, %110 : vector<16x128xf32>
    %114 = arith.mulf %113, %110 : vector<16x128xf32>
    %cst_41 = arith.constant 4.471500e-02 : f32
    %115 = vector.broadcast %cst_41 : f32 to vector<16x128xf32>
    %116 = arith.mulf %115, %114 : vector<16x128xf32>
    %117 = arith.addf %110, %116 : vector<16x128xf32>
    %cst_42 = arith.constant 0.797884583 : f32
    %118 = vector.broadcast %cst_42 : f32 to vector<16x128xf32>
    %119 = arith.mulf %118, %117 : vector<16x128xf32>
    %120 = math.tanh %119 : vector<16x128xf32>
    %cst_43 = arith.constant 1.000000e+00 : f32
    %121 = vector.broadcast %cst_43 : f32 to vector<16x128xf32>
    %122 = arith.addf %121, %120 : vector<16x128xf32>
    %123 = arith.mulf %112, %122 : vector<16x128xf32>
    %c0_44 = arith.constant 0 : index
    %c0_45 = arith.constant 0 : index
    %124 = vector.load %arg12[%c0_44, %c0_45] : memref<128x32xf32, #tpu.memory_space<vmem>>, vector<128x32xf32>
    %cst_46 = arith.constant dense<0.000000e+00> : vector<16x32xf32>
    %125 = tpu.matmul %123, %124, %cst_46 {dimension_numbers = #tpu.dot_dimension_numbers<[1], [0], [0], [1], [0, 0, 1, 1], [], []>} : vector<16x128xf32>, vector<128x32xf32>, vector<16x32xf32> -> vector<16x32xf32>
    %c0_47 = arith.constant 0 : index
    %c0_48 = arith.constant 0 : index
    %126 = vector.load %arg13[%c0_47, %c0_48] : memref<1x32xf32, #tpu.memory_space<vmem>>, vector<1x32xf32>
    %127 = vector.shape_cast %126 : vector<1x32xf32> to vector<32xf32>
    %128 = vector.shape_cast %127 : vector<32xf32> to vector<1x32xf32>
    %129 = vector.broadcast %128 : vector<1x32xf32> to vector<16x32xf32>
    %130 = arith.addf %125, %129 : vector<16x32xf32>
    %131 = arith.addf %75, %130 : vector<16x32xf32>
    %c0_49 = arith.constant 0 : index
    %c0_50 = arith.constant 0 : index
    %c0_51 = arith.constant 0 : index
    %132 = vector.load %arg14[%c0_49, %c0_50, %c0_51] : memref<1x16x32xf32, #tpu.memory_space<vmem>>, vector<1x16x32xf32>
    %133 = vector.shape_cast %132 : vector<1x16x32xf32> to vector<16x32xf32>
    %134 = vector.shape_cast %131 : vector<16x32xf32> to vector<1x16x32xf32>
    tpu.vector_store %arg14[%c0_49, %c0_50, %c0_51], %134 {strides = array<i32>} : memref<1x16x32xf32, #tpu.memory_space<vmem>>, vector<1x16x32xf32>,
    return
  }
  func.func @transform_0(%arg0: i32) -> (i32, i32, i32) {
    %c0_i32 = arith.constant 0 : i32
    %c0_i32_0 = arith.constant 0 : i32
    %c0_i32_1 = arith.constant 0 : i32
    return %arg0, %c0_i32, %c0_i32_0 : i32, i32, i32
  }
  func.func @transform_1(%arg0: i32) -> (i32, i32) {
    %c0_i32 = arith.constant 0 : i32
    %c0_i32_0 = arith.constant 0 : i32
    %c0_i32_1 = arith.constant 0 : i32
    return %c0_i32, %c0_i32_0 : i32, i32
  }
  func.func @transform_2(%arg0: i32) -> (i32, i32) {
    %c0_i32 = arith.constant 0 : i32
    %c0_i32_0 = arith.constant 0 : i32
    %c0_i32_1 = arith.constant 0 : i32
    return %c0_i32, %c0_i32_0 : i32, i32
  }
  func.func @transform_3(%arg0: i32) -> (i32, i32) {
    %c0_i32 = arith.constant 0 : i32
    %c0_i32_0 = arith.constant 0 : i32
    %c0_i32_1 = arith.constant 0 : i32
    return %c0_i32, %c0_i32_0 : i32, i32
  }
  func.func @transform_4(%arg0: i32) -> (i32, i32) {
    %c0_i32 = arith.constant 0 : i32
    %c0_i32_0 = arith.constant 0 : i32
    %c0_i32_1 = arith.constant 0 : i32
    return %c0_i32, %c0_i32_0 : i32, i32
  }
  func.func @transform_5(%arg0: i32) -> (i32, i32) {
    %c0_i32 = arith.constant 0 : i32
    %c0_i32_0 = arith.constant 0 : i32
    %c0_i32_1 = arith.constant 0 : i32
    return %c0_i32, %c0_i32_0 : i32, i32
  }
  func.func @transform_6(%arg0: i32) -> (i32, i32) {
    %c0_i32 = arith.constant 0 : i32
    %c0_i32_0 = arith.constant 0 : i32
    %c0_i32_1 = arith.constant 0 : i32
    return %c0_i32, %c0_i32_0 : i32, i32
  }
  func.func @transform_7(%arg0: i32) -> (i32, i32) {
    %c0_i32 = arith.constant 0 : i32
    %c0_i32_0 = arith.constant 0 : i32
    %c0_i32_1 = arith.constant 0 : i32
    return %c0_i32, %c0_i32_0 : i32, i32
  }
  func.func @transform_8(%arg0: i32) -> (i32, i32) {
    %c0_i32 = arith.constant 0 : i32
    %c0_i32_0 = arith.constant 0 : i32
    %c0_i32_1 = arith.constant 0 : i32
    return %c0_i32, %c0_i32_0 : i32, i32
  }
  func.func @transform_9(%arg0: i32) -> (i32, i32) {
    %c0_i32 = arith.constant 0 : i32
    %c0_i32_0 = arith.constant 0 : i32
    %c0_i32_1 = arith.constant 0 : i32
    return %c0_i32, %c0_i32_0 : i32, i32
  }
  func.func @transform_10(%arg0: i32) -> (i32, i32) {
    %c0_i32 = arith.constant 0 : i32
    %c0_i32_0 = arith.constant 0 : i32
    %c0_i32_1 = arith.constant 0 : i32
    return %c0_i32, %c0_i32_0 : i32, i32
  }
  func.func @transform_11(%arg0: i32) -> (i32, i32) {
    %c0_i32 = arith.constant 0 : i32
    %c0_i32_0 = arith.constant 0 : i32
    %c0_i32_1 = arith.constant 0 : i32
    return %c0_i32, %c0_i32_0 : i32, i32
  }
  func.func @transform_12(%arg0: i32) -> (i32, i32) {
    %c0_i32 = arith.constant 0 : i32
    %c0_i32_0 = arith.constant 0 : i32
    %c0_i32_1 = arith.constant 0 : i32
    return %c0_i32, %c0_i32_0 : i32, i32
  }
  func.func @transform_13(%arg0: i32) -> (i32, i32, i32) {
    %c0_i32 = arith.constant 0 : i32
    %c0_i32_0 = arith.constant 0 : i32
    %c0_i32_1 = arith.constant 0 : i32
    return %arg0, %c0_i32, %c0_i32_0 : i32, i32, i32
  }
}

</mosaic_0001>

<llo_original>
// kernel: tpu_custom_call.1
$region0: #{tpu_custom_call.1}
  #allocation0 [shape = 'u32[]', space=smem, size = 0x4, offset = 0x4, fixed_abs, tag = 'smem constant byte address 0x4 - core index']
  #allocation1 [shape = 'u32[144,128]{1,0:T(1,128)}', space=vmem, size = 0x12000, scoped, tag = 'internal scratch']
  %s0 = inlined_call_operand.vmem [shape: f32[2,16,32], index: 0, kind: input, shape index: {}]
  %s1 = inlined_call_operand.vmem [shape: f32[32,96], index: 1, kind: input, shape index: {}]
  %s2 = inlined_call_operand.vmem [shape: f32[1,96], index: 2, kind: input, shape index: {}]
  %s3 = inlined_call_operand.vmem [shape: f32[32,32], index: 3, kind: input, shape index: {}]
  %s4 = inlined_call_operand.vmem [shape: f32[1,32], index: 4, kind: input, shape index: {}]
  %s5 = inlined_call_operand.vmem [shape: f32[1,32], index: 5, kind: input, shape index: {}]
  %s6 = inlined_call_operand.vmem [shape: f32[1,32], index: 6, kind: input, shape index: {}]
  %s7 = inlined_call_operand.vmem [shape: f32[1,32], index: 7, kind: input, shape index: {}]
  %s8 = inlined_call_operand.vmem [shape: f32[1,32], index: 8, kind: input, shape index: {}]
  %s9 = inlined_call_operand.vmem [shape: f32[32,128], index: 9, kind: input, shape index: {}]
  %s10 = inlined_call_operand.vmem [shape: f32[1,128], index: 10, kind: input, shape index: {}]
  %s11 = inlined_call_operand.vmem [shape: f32[128,32], index: 11, kind: input, shape index: {}]
  %s12 = inlined_call_operand.vmem [shape: f32[1,32], index: 12, kind: input, shape index: {}]
  %s13 = inlined_call_operand.hbm [shape: f32[2,16,32], index: 13, kind: output, shape index: {}]
  %s14 = sld [smem:[#allocation0]]
  $region85: #{tpu_custom_call.1} parent=0
    _
  %s16 = ssub.s32 1, %s14
  %s17 = scalar_select 0, %s16, %s14
  $region1: #{tpu_custom_call.1} parent=0
    #allocation2 [shape = 'u8[16384]{0}', space=vmem, size = 0x4000, scoped, tag = 'output window, operand 0']
    #allocation3 [shape = 's32[2]{0}', space=sflag, size = 0x8, scoped, tag = 'scoped memory for tpu_custom_call.1']
    %18 = vsyncpa [#allocation3], 0
    %s19 = scalar_lea.sflag [#allocation3], 1
    %20 = vsyncpa %s19, 0
    loop: start=0, step=1, limit=4
    $region2: #{tpu_custom_call.1} parent=1 // loop_pre_header
      _
    $region3: #{tpu_custom_call.1} parent=1 // loop_header
      %s22 = sphi 0, %s26
      %p23 = scmp.ge.s32.totalorder %s22, 4
      %s32 = sphi 0, %s34
      %s35 = sphi 0, %s32
      %s36 = sphi 0, %s35
      %s52 = sphi 0, %s36
      %s56 = sphi 0, %s56
      %s58 = sphi 0, %s56
      %s59 = sphi 0, %s58
      %s73 = sphi 0, %s59
      %s77 = sphi 0, %s77
      %s79 = sphi 0, %s77
      %s80 = sphi 0, %s79
      %s94 = sphi 0, %s80
      %s98 = sphi 0, %s98
      %s100 = sphi 0, %s98
      %s101 = sphi 0, %s100
      %s115 = sphi 0, %s101
      %s119 = sphi 0, %s119
      %s121 = sphi 0, %s119
      %s122 = sphi 0, %s121
      %s136 = sphi 0, %s122
      %s140 = sphi 0, %s140
      %s142 = sphi 0, %s140
      %s143 = sphi 0, %s142
      %s157 = sphi 0, %s143
      %s161 = sphi 0, %s161
      %s163 = sphi 0, %s161
      %s164 = sphi 0, %s163
      %s178 = sphi 0, %s164
      %s182 = sphi 0, %s182
      %s184 = sphi 0, %s182
      %s185 = sphi 0, %s184
      %s199 = sphi 0, %s185
      %s203 = sphi 0, %s203
      %s205 = sphi 0, %s203
      %s206 = sphi 0, %s205
      %s220 = sphi 0, %s206
      %s224 = sphi 0, %s224
      %s226 = sphi 0, %s224
      %s227 = sphi 0, %s226
      %s241 = sphi 0, %s227
      %s245 = sphi 0, %s245
      %s247 = sphi 0, %s245
      %s248 = sphi 0, %s247
      %s262 = sphi 0, %s248
      %s266 = sphi 0, %s266
      %s268 = sphi 0, %s266
      %s269 = sphi 0, %s268
      %s283 = sphi 0, %s269
      %s287 = sphi 0, %s287
      %s289 = sphi 0, %s287
      %s290 = sphi 0, %s289
      %s304 = sphi 0, %s290
      %s310 = sphi 0, %s312
      %s313 = sphi 0, %s310
      %s314 = sphi 0, %s313
      %s330 = sphi 0, %s314
    $region4: #{tpu_custom_call.1} parent=1 // loop_header_branch
      %25 = sbr.rel (%p23) target = $region8
    $region5: #{tpu_custom_call.1} parent=1 // loop_body
      %s27 = ssub.s32 %s22, 1
      %s28 = ssub.s32 %s22, 2
      %s29 = sadd.s32 %s22, 1
      %s30 = ssub.s32 %s22, %s29
      %p31 = scmp.eq.s32.totalorder %s30, 0
      %s33 = sadd.s32 %s32, 1
      %s34 = scalar_select %p31, %s32, %s33
      %p37 = pneg %p31
      %p38 = scmp.eq.s32.totalorder %s22, 1
      %p39 = por %p37, %p38
      %p40 = scmp.ne.s32.totalorder %s32, %s35
      %p41 = scmp.eq.s32.totalorder %s22, 0
      %p42 = por %p40, %p41
      %p43 = scmp.ne.s32.totalorder %s32, %s35
      %p44 = scmp.eq.s32.totalorder %s27, 1
      %p45 = por %p43, %p44
      %p46 = scmp.ne.s32.totalorder %s35, %s36
      %p47 = scmp.eq.s32.totalorder %s27, 0
      %p48 = por %p46, %p47
      %p49 = scmp.ne.s32.totalorder %s35, %s36
      %p50 = scmp.eq.s32.totalorder %s28, 1
      %p51 = por %p49, %p50
      %p53 = scmp.ne.s32.totalorder %s36, %s52
      %p54 = scmp.eq.s32.totalorder %s28, 0
      %p55 = por %p53, %p54
      %s57 = sadd.s32 %s56, 1
      %p60 = scmp.eq.s32.totalorder %s22, 1
      %p61 = scmp.ne.s32.totalorder %s56, %s58
      %p62 = scmp.eq.s32.totalorder %s22, 0
      %p63 = por %p61, %p62
      %p64 = scmp.ne.s32.totalorder %s56, %s58
      %p65 = scmp.eq.s32.totalorder %s27, 1
      %p66 = por %p64, %p65
      %p67 = scmp.ne.s32.totalorder %s58, %s59
      %p68 = scmp.eq.s32.totalorder %s27, 0
      %p69 = por %p67, %p68
      %p70 = scmp.ne.s32.totalorder %s58, %s59
      %p71 = scmp.eq.s32.totalorder %s28, 1
      %p72 = por %p70, %p71
      %p74 = scmp.ne.s32.totalorder %s59, %s73
      %p75 = scmp.eq.s32.totalorder %s28, 0
      %p76 = por %p74, %p75
      %s78 = sadd.s32 %s77, 1
      %p81 = scmp.eq.s32.totalorder %s22, 1
      %p82 = scmp.ne.s32.totalorder %s77, %s79
      %p83 = scmp.eq.s32.totalorder %s22, 0
      %p84 = por %p82, %p83
      %p85 = scmp.ne.s32.totalorder %s77, %s79
      %p86 = scmp.eq.s32.totalorder %s27, 1
      %p87 = por %p85, %p86
      %p88 = scmp.ne.s32.totalorder %s79, %s80
      %p89 = scmp.eq.s32.totalorder %s27, 0
      %p90 = por %p88, %p89
      %p91 = scmp.ne.s32.totalorder %s79, %s80
      %p92 = scmp.eq.s32.totalorder %s28, 1
      %p93 = por %p91, %p92
      %p95 = scmp.ne.s32.totalorder %s80, %s94
      %p96 = scmp.eq.s32.totalorder %s28, 0
      %p97 = por %p95, %p96
      %s99 = sadd.s32 %s98, 1
      %p102 = scmp.eq.s32.totalorder %s22, 1
      %p103 = scmp.ne.s32.totalorder %s98, %s100
      %p104 = scmp.eq.s32.totalorder %s22, 0
      %p105 = por %p103, %p104
      %p106 = scmp.ne.s32.totalorder %s98, %s100
      %p107 = scmp.eq.s32.totalorder %s27, 1
      %p108 = por %p106, %p107
      %p109 = scmp.ne.s32.totalorder %s100, %s101
      %p110 = scmp.eq.s32.totalorder %s27, 0
      %p111 = por %p109, %p110
      %p112 = scmp.ne.s32.totalorder %s100, %s101
      %p113 = scmp.eq.s32.totalorder %s28, 1
      %p114 = por %p112, %p113
      %p116 = scmp.ne.s32.totalorder %s101, %s115
      %p117 = scmp.eq.s32.totalorder %s28, 0
      %p118 = por %p116, %p117
      %s120 = sadd.s32 %s119, 1
      %p123 = scmp.eq.s32.totalorder %s22, 1
      %p124 = scmp.ne.s32.totalorder %s119, %s121
      %p125 = scmp.eq.s32.totalorder %s22, 0
      %p126 = por %p124, %p125
      %p127 = scmp.ne.s32.totalorder %s119, %s121
      %p128 = scmp.eq.s32.totalorder %s27, 1
      %p129 = por %p127, %p128
      %p130 = scmp.ne.s32.totalorder %s121, %s122
      %p131 = scmp.eq.s32.totalorder %s27, 0
      %p132 = por %p130, %p131
      %p133 = scmp.ne.s32.totalorder %s121, %s122
      %p134 = scmp.eq.s32.totalorder %s28, 1
      %p135 = por %p133, %p134
      %p137 = scmp.ne.s32.totalorder %s122, %s136
      %p138 = scmp.eq.s32.totalorder %s28, 0
      %p139 = por %p137, %p138
      %s141 = sadd.s32 %s140, 1
      %p144 = scmp.eq.s32.totalorder %s22, 1
      %p145 = scmp.ne.s32.totalorder %s140, %s142
      %p146 = scmp.eq.s32.totalorder %s22, 0
      %p147 = por %p145, %p146
      %p148 = scmp.ne.s32.totalorder %s140, %s142
      %p149 = scmp.eq.s32.totalorder %s27, 1
      %p150 = por %p148, %p149
      %p151 = scmp.ne.s32.totalorder %s142, %s143
      %p152 = scmp.eq.s32.totalorder %s27, 0
      %p153 = por %p151, %p152
      %p154 = scmp.ne.s32.totalorder %s142, %s143
      %p155 = scmp.eq.s32.totalorder %s28, 1
      %p156 = por %p154, %p155
      %p158 = scmp.ne.s32.totalorder %s143, %s157
      %p159 = scmp.eq.s32.totalorder %s28, 0
      %p160 = por %p158, %p159
      %s162 = sadd.s32 %s161, 1
      %p165 = scmp.eq.s32.totalorder %s22, 1
      %p166 = scmp.ne.s32.totalorder %s161, %s163
      %p167 = scmp.eq.s32.totalorder %s22, 0
      %p168 = por %p166, %p167
      %p169 = scmp.ne.s32.totalorder %s161, %s163
      %p170 = scmp.eq.s32.totalorder %s27, 1
      %p171 = por %p169, %p170
      %p172 = scmp.ne.s32.totalorder %s163, %s164
      %p173 = scmp.eq.s32.totalorder %s27, 0
      %p174 = por %p172, %p173
      %p175 = scmp.ne.s32.totalorder %s163, %s164
      %p176 = scmp.eq.s32.totalorder %s28, 1
      %p177 = por %p175, %p176
      %p179 = scmp.ne.s32.totalorder %s164, %s178
      %p180 = scmp.eq.s32.totalorder %s28, 0
      %p181 = por %p179, %p180
      %s183 = sadd.s32 %s182, 1
      %p186 = scmp.eq.s32.totalorder %s22, 1
      %p187 = scmp.ne.s32.totalorder %s182, %s184
      %p188 = scmp.eq.s32.totalorder %s22, 0
      %p189 = por %p187, %p188
      %p190 = scmp.ne.s32.totalorder %s182, %s184
      %p191 = scmp.eq.s32.totalorder %s27, 1
      %p192 = por %p190, %p191
      %p193 = scmp.ne.s32.totalorder %s184, %s185
      %p194 = scmp.eq.s32.totalorder %s27, 0
      %p195 = por %p193, %p194
      %p196 = scmp.ne.s32.totalorder %s184, %s185
      %p197 = scmp.eq.s32.totalorder %s28, 1
      %p198 = por %p196, %p197
      %p200 = scmp.ne.s32.totalorder %s185, %s199
      %p201 = scmp.eq.s32.totalorder %s28, 0
      %p202 = por %p200, %p201
      %s204 = sadd.s32 %s203, 1
      %p207 = scmp.eq.s32.totalorder %s22, 1
      %p208 = scmp.ne.s32.totalorder %s203, %s205
      %p209 = scmp.eq.s32.totalorder %s22, 0
      %p210 = por %p208, %p209
      %p211 = scmp.ne.s32.totalorder %s203, %s205
      %p212 = scmp.eq.s32.totalorder %s27, 1
      %p213 = por %p211, %p212
      %p214 = scmp.ne.s32.totalorder %s205, %s206
      %p215 = scmp.eq.s32.totalorder %s27, 0
      %p216 = por %p214, %p215
      %p217 = scmp.ne.s32.totalorder %s205, %s206
      %p218 = scmp.eq.s32.totalorder %s28, 1
      %p219 = por %p217, %p218
      %p221 = scmp.ne.s32.totalorder %s206, %s220
      %p222 = scmp.eq.s32.totalorder %s28, 0
      %p223 = por %p221, %p222
      %s225 = sadd.s32 %s224, 1
      %p228 = scmp.eq.s32.totalorder %s22, 1
      %p229 = scmp.ne.s32.totalorder %s224, %s226
      %p230 = scmp.eq.s32.totalorder %s22, 0
      %p231 = por %p229, %p230
      %p232 = scmp.ne.s32.totalorder %s224, %s226
      %p233 = scmp.eq.s32.totalorder %s27, 1
      %p234 = por %p232, %p233
      %p235 = scmp.ne.s32.totalorder %s226, %s227
      %p236 = scmp.eq.s32.totalorder %s27, 0
      %p237 = por %p235, %p236
      %p238 = scmp.ne.s32.totalorder %s226, %s227
      %p239 = scmp.eq.s32.totalorder %s28, 1
      %p240 = por %p238, %p239
      %p242 = scmp.ne.s32.totalorder %s227, %s241
      %p243 = scmp.eq.s32.totalorder %s28, 0
      %p244 = por %p242, %p243
      %s246 = sadd.s32 %s245, 1
      %p249 = scmp.eq.s32.totalorder %s22, 1
      %p250 = scmp.ne.s32.totalorder %s245, %s247
      %p251 = scmp.eq.s32.totalorder %s22, 0
      %p252 = por %p250, %p251
      %p253 = scmp.ne.s32.totalorder %s245, %s247
      %p254 = scmp.eq.s32.totalorder %s27, 1
      %p255 = por %p253, %p254
      %p256 = scmp.ne.s32.totalorder %s247, %s248
      %p257 = scmp.eq.s32.totalorder %s27, 0
      %p258 = por %p256, %p257
      %p259 = scmp.ne.s32.totalorder %s247, %s248
      %p260 = scmp.eq.s32.totalorder %s28, 1
      %p261 = por %p259, %p260
      %p263 = scmp.ne.s32.totalorder %s248, %s262
      %p264 = scmp.eq.s32.totalorder %s28, 0
      %p265 = por %p263, %p264
      %s267 = sadd.s32 %s266, 1
      %p270 = scmp.eq.s32.totalorder %s22, 1
      %p271 = scmp.ne.s32.totalorder %s266, %s268
      %p272 = scmp.eq.s32.totalorder %s22, 0
      %p273 = por %p271, %p272
      %p274 = scmp.ne.s32.totalorder %s266, %s268
      %p275 = scmp.eq.s32.totalorder %s27, 1
      %p276 = por %p274, %p275
      %p277 = scmp.ne.s32.totalorder %s268, %s269
      %p278 = scmp.eq.s32.totalorder %s27, 0
      %p279 = por %p277, %p278
      %p280 = scmp.ne.s32.totalorder %s268, %s269
      %p281 = scmp.eq.s32.totalorder %s28, 1
      %p282 = por %p280, %p281
      %p284 = scmp.ne.s32.totalorder %s269, %s283
      %p285 = scmp.eq.s32.totalorder %s28, 0
      %p286 = por %p284, %p285
      %s288 = sadd.s32 %s287, 1
      %p291 = scmp.eq.s32.totalorder %s22, 1
      %p292 = scmp.ne.s32.totalorder %s287, %s289
      %p293 = scmp.eq.s32.totalorder %s22, 0
      %p294 = por %p292, %p293
      %p295 = scmp.ne.s32.totalorder %s287, %s289
      %p296 = scmp.eq.s32.totalorder %s27, 1
      %p297 = por %p295, %p296
      %p298 = scmp.ne.s32.totalorder %s289, %s290
      %p299 = scmp.eq.s32.totalorder %s27, 0
      %p300 = por %p298, %p299
      %p301 = scmp.ne.s32.totalorder %s289, %s290
      %p302 = scmp.eq.s32.totalorder %s28, 1
      %p303 = por %p301, %p302
      %p305 = scmp.ne.s32.totalorder %s290, %s304
      %p306 = scmp.eq.s32.totalorder %s28, 0
      %p307 = por %p305, %p306
      %s308 = ssub.s32 %s22, %s29
      %p309 = scmp.eq.s32.totalorder %s308, 0
      %s311 = sadd.s32 %s310, 1
      %s312 = scalar_select %p309, %s310, %s311
      %p315 = pneg %p309
      %p316 = scmp.eq.s32.totalorder %s22, 1
      %p317 = por %p315, %p316
      %p318 = scmp.ne.s32.totalorder %s310, %s313
      %p319 = scmp.eq.s32.totalorder %s22, 0
      %p320 = por %p318, %p319
      %p321 = scmp.ne.s32.totalorder %s310, %s313
      %p322 = scmp.eq.s32.totalorder %s27, 1
      %p323 = por %p321, %p322
      %p324 = scmp.ne.s32.totalorder %s313, %s314
      %p325 = scmp.eq.s32.totalorder %s27, 0
      %p326 = por %p324, %p325
      %p327 = scmp.ne.s32.totalorder %s313, %s314
      %p328 = scmp.eq.s32.totalorder %s28, 1
      %p329 = por %p327, %p328
      %p331 = scmp.ne.s32.totalorder %s314, %s330
      %p332 = scmp.eq.s32.totalorder %s28, 0
      %p333 = por %p331, %p332
      %p334 = scmp.le.s32.totalorder 1, %s22
      %p335 = scmp.lt.s32.totalorder %s22, 3
      %p336 = pnand %p334, %p335
      %p337 = pneg %p336
      // Predicated region
      $region9: #{tpu_custom_call.1} parent=5 // pred_check
        _
      $region10: #{tpu_custom_call.1} parent=5 // pred_check_branch
        %339 = sbr.rel (%p336) target = $region12
      $region11: #{tpu_custom_call.1} parent=5 // pred_region
        %s340 = ssub.s32 %s22, 1
        // Predicated region
        $region13: #{tpu_custom_call.1} parent=11 // pred_check
          %p341 = pneg %p69
        $region14: #{tpu_custom_call.1} parent=11 // pred_check_branch
          %343 = sbr.rel (%p341) target = $region16
        $region15: #{tpu_custom_call.1} parent=11 // pred_region
          _
        $region16: #{tpu_custom_call.1} parent=11 // pred_fallthru
          _
        // Predicated region
        $region17: #{tpu_custom_call.1} parent=11 // pred_check
          %p344 = pneg %p90
        $region18: #{tpu_custom_call.1} parent=11 // pred_check_branch
          %346 = sbr.rel (%p344) target = $region20
        $region19: #{tpu_custom_call.1} parent=11 // pred_region
          _
        $region20: #{tpu_custom_call.1} parent=11 // pred_fallthru
          _
        // Predicated region
        $region21: #{tpu_custom_call.1} parent=11 // pred_check
          %p347 = pneg %p111
        $region22: #{tpu_custom_call.1} parent=11 // pred_check_branch
          %349 = sbr.rel (%p347) target = $region24
        $region23: #{tpu_custom_call.1} parent=11 // pred_region
          _
        $region24: #{tpu_custom_call.1} parent=11 // pred_fallthru
          _
        // Predicated region
        $region25: #{tpu_custom_call.1} parent=11 // pred_check
          %p350 = pneg %p132
        $region26: #{tpu_custom_call.1} parent=11 // pred_check_branch
          %352 = sbr.rel (%p350) target = $region28
        $region27: #{tpu_custom_call.1} parent=11 // pred_region
          _
        $region28: #{tpu_custom_call.1} parent=11 // pred_fallthru
          _
        // Predicated region
        $region29: #{tpu_custom_call.1} parent=11 // pred_check
          %p353 = pneg %p153
        $region30: #{tpu_custom_call.1} parent=11 // pred_check_branch
          %355 = sbr.rel (%p353) target = $region32
        $region31: #{tpu_custom_call.1} parent=11 // pred_region
          _
        $region32: #{tpu_custom_call.1} parent=11 // pred_fallthru
          _
        // Predicated region
        $region33: #{tpu_custom_call.1} parent=11 // pred_check
          %p356 = pneg %p174
        $region34: #{tpu_custom_call.1} parent=11 // pred_check_branch
          %358 = sbr.rel (%p356) target = $region36
        $region35: #{tpu_custom_call.1} parent=11 // pred_region
          _
        $region36: #{tpu_custom_call.1} parent=11 // pred_fallthru
          _
        // Predicated region
        $region37: #{tpu_custom_call.1} parent=11 // pred_check
          %p359 = pneg %p195
        $region38: #{tpu_custom_call.1} parent=11 // pred_check_branch
          %361 = sbr.rel (%p359) target = $region40
        $region39: #{tpu_custom_call.1} parent=11 // pred_region
          _
        $region40: #{tpu_custom_call.1} parent=11 // pred_fallthru
          _
        // Predicated region
        $region41: #{tpu_custom_call.1} parent=11 // pred_check
          %p362 = pneg %p216
        $region42: #{tpu_custom_call.1} parent=11 // pred_check_branch
          %364 = sbr.rel (%p362) target = $region44
        $region43: #{tpu_custom_call.1} parent=11 // pred_region
          _
        $region44: #{tpu_custom_call.1} parent=11 // pred_fallthru
          _
        // Predicated region
        $region45: #{tpu_custom_call.1} parent=11 // pred_check
          %p365 = pneg %p237
        $region46: #{tpu_custom_call.1} parent=11 // pred_check_branch
          %367 = sbr.rel (%p365) target = $region48
        $region47: #{tpu_custom_call.1} parent=11 // pred_region
          _
        $region48: #{tpu_custom_call.1} parent=11 // pred_fallthru
          _
        // Predicated region
        $region49: #{tpu_custom_call.1} parent=11 // pred_check
          %p368 = pneg %p258
        $region50: #{tpu_custom_call.1} parent=11 // pred_check_branch
          %370 = sbr.rel (%p368) target = $region52
        $region51: #{tpu_custom_call.1} parent=11 // pred_region
          _
        $region52: #{tpu_custom_call.1} parent=11 // pred_fallthru
          _
        // Predicated region
        $region53: #{tpu_custom_call.1} parent=11 // pred_check
          %p371 = pneg %p279
        $region54: #{tpu_custom_call.1} parent=11 // pred_check_branch
          %373 = sbr.rel (%p371) target = $region56
        $region55: #{tpu_custom_call.1} parent=11 // pred_region
          _
        $region56: #{tpu_custom_call.1} parent=11 // pred_fallthru
          _
        // Predicated region
        $region57: #{tpu_custom_call.1} parent=11 // pred_check
          %p374 = pneg %p300
        $region58: #{tpu_custom_call.1} parent=11 // pred_check_branch
          %376 = sbr.rel (%p374) target = $region60
        $region59: #{tpu_custom_call.1} parent=11 // pred_region
          _
        $region60: #{tpu_custom_call.1} parent=11 // pred_fallthru
          _
      $region12: #{tpu_custom_call.1} parent=5 // pred_fallthru
        _
      %p377 = scmp.lt.s32.totalorder %s22, 2
      // Predicated region
      $region61: #{tpu_custom_call.1} parent=5 // pred_check
        %p378 = pneg %p377
      $region62: #{tpu_custom_call.1} parent=5 // pred_check_branch
        %380 = sbr.rel (%p378) target = $region64
      $region63: #{tpu_custom_call.1} parent=5 // pred_region
        // Predicated region
        $region65: #{tpu_custom_call.1} parent=63 // pred_check
          %p381 = pneg %p42
        $region66: #{tpu_custom_call.1} parent=63 // pred_check_branch
          %383 = sbr.rel (%p381) target = $region68
        $region67: #{tpu_custom_call.1} parent=63 // pred_region
          %p384 = scmp.lt.s32.totalorder %s22, 1
          %s385 = scalar_select %p384, %s22, 1
          %s386 = smul.addr %s385, 2
          %s387 = smul.addr %s386, 8
          %s388 = scalar_lea.vmem %s0, %s387
        $region68: #{tpu_custom_call.1} parent=63 // pred_fallthru
          _
      $region64: #{tpu_custom_call.1} parent=5 // pred_fallthru
        _
      %p389 = scmp.le.s32.totalorder 1, %s22
      %p390 = scmp.lt.s32.totalorder %s22, 3
      %p391 = pnand %p389, %p390
      %p392 = pneg %p391
      // Predicated region
      $region69: #{tpu_custom_call.1} parent=5 // pred_check
        _
      $region70: #{tpu_custom_call.1} parent=5 // pred_check_branch
        %394 = sbr.rel (%p391) target = $region72
      $region71: #{tpu_custom_call.1} parent=5 // pred_region
        %s395 = ssub.s32 %s22, 1
        %p396 = scmp.lt.s32.totalorder %s27, 1
        %s397 = scalar_select %p396, %s27, 1
        %s398 = smul.addr %s397, 2
        %s399 = smul.addr %s398, 8
        %s400 = scalar_lea.vmem %s0, %s399
        %p401 = pneg %p48
        %p402 = pneg %p45
        %p403 = pneg %p69
        %p404 = pneg %p66
        %p405 = pneg %p90
        %p406 = pneg %p87
        %p407 = pneg %p111
        %p408 = pneg %p108
        %p409 = pneg %p132
        %p410 = pneg %p129
        %p411 = pneg %p153
        %p412 = pneg %p150
        %p413 = pneg %p174
        %p414 = pneg %p171
        %p415 = pneg %p195
        %p416 = pneg %p192
        %p417 = pneg %p216
        %p418 = pneg %p213
        %p419 = pneg %p237
        %p420 = pneg %p234
        %p421 = pneg %p258
        %p422 = pneg %p255
        %p423 = pneg %p279
        %p424 = pneg %p276
        %p425 = pneg %p300
        %p426 = pneg %p297
        %p427 = pneg %p326
        %p428 = pneg %p323
        %s429 = sand.u32 %s313, 1
        %s430 = scalar_lea.sflag [#allocation3], %s429
        %s431 = sand.u32 %s313, 1
        %s432 = smul.addr %s431, 16
        %s433 = scalar_lea.vmem [#allocation2], %s432
        %p434 = scmp.lt.s32.totalorder %s27, 1
        %s435 = scalar_select %p434, %s27, 1
        %s436 = smul.addr %s435, 2
        %s437 = smul.addr %s436, 8
        %s438 = scalar_lea.vmem %s0, %s437
        %v439 = vld [vmem:[%s438] sm:$0xff]
        %v440 = vld [vmem:[%s438 + $0x8] sm:$0xff]
        %v441 = vld [vmem:[%s5] sm:$0x1]
        %v442 = vld [vmem:[%s6] sm:$0x1]
        %vm443 = vcmask 261120
        %v444 = vsel %vm443, %v439, 0.0
        %445 = vadd.xlane.f32.xlu0 %v444
        %v446 = vpop.xlane.xlu0 %445
        %v447 = vsel %vm443, %v440, 0.0
        %448 = vadd.xlane.f32.xlu0 %v447
        %v449 = vpop.xlane.xlu0 %448
        %v450 = vrcp.pop 32.0
        %v451 = vmul.f32 %v446, %v450
        %v452 = vmul.f32 %v449, %v450
        %v453 = vsub.f32 %v439, %v451
        %v454 = vsub.f32 %v440, %v452
        %v455 = vmul.f32 %v453, %v453
        %v456 = vmul.f32 %v454, %v454
        %v457 = vsel %vm443, %v455, 0.0
        %458 = vadd.xlane.f32.xlu0 %v457
        %v459 = vpop.xlane.xlu0 %458
        %v460 = vsel %vm443, %v456, 0.0
        %461 = vadd.xlane.f32.xlu0 %v460
        %v462 = vpop.xlane.xlu0 %461
        %v463 = vmul.f32 %v459, %v450
        %v464 = vmul.f32 %v462, %v450
        %v465 = vadd.f32 %v463, 1e-05
        %v466 = vadd.f32 %v464, 1e-05
        %v467 = vrsqrt.pop %v465
        %v468 = vrsqrt.pop %v466
        %v469 = vmul.f32 %v453, %v467
        %v470 = vmul.f32 %v454, %v468
        %v472 = vlaneseq
        %v473 = vshrl.u32 %v472, 7
        %v474 = vsub.s32 0, %v473
        %v475 = vrot.slane %v441, %v474
        %v477 = vmul.f32 %v469, %v475
        %v478 = vmul.f32 %v470, %v475
        %v480 = vlaneseq
        %v481 = vshrl.u32 %v480, 7
        %v482 = vsub.s32 0, %v481
        %v483 = vrot.slane %v442, %v482
        %v485 = vadd.f32 %v477, %v483
        %v486 = vadd.f32 %v478, %v483
        %v487 = vld [vmem:[%s1] sm:$0xff]
        %v488 = vld [vmem:[%s1 + $0x8] sm:$0xff]
        %v489 = vld [vmem:[%s1 + $0x10] sm:$0xff]
        %v490 = vld [vmem:[%s1 + $0x18] sm:$0xff]
        %v491 = vld [vmem:[%s2] sm:$0x1]
        %v493 = vlaneseq
        %v494 = vshrl.u32 %v493, 7
        %v495 = vsub.s32 0, %v494
        %v496 = vrot.slane %v491, %v495
        %v499 = vsel %vm443, %v485, 0
        %v502 = vsel %vm443, %v486, 0
        %504 = vmatprep.subr.mxu0 0.0
        %505 = vmatpush1.msra.mxu0 0.0
        %506 = vmatprep.subr.mxu0 0.0
        %507 = vmatpush1.msra.mxu0 0.0
        %508 = vmatprep.subr.mxu0 0.0
        %509 = vmatpush1.msra.mxu0 0.0
        %510 = vmatprep.subr.mxu0 0.0
        %511 = vmatpush1.msra.mxu0 0.0
        %512 = vmatprep.subr.mxu0 0.0
        %513 = vmatpush1.msra.mxu0 0.0
        %514 = vmatprep.subr.mxu0 0.0
        %515 = vmatpush1.msra.mxu0 0.0
        %516 = vmatprep.subr.mxu0 0.0
        %517 = vmatpush1.msra.mxu0 0.0
        %518 = vmatprep.subr.mxu0 0.0
        %519 = vmatpush1.msra.mxu0 0.0
        %520 = vmatprep.subr.mxu0 0.0
        %521 = vmatpush1.msra.mxu0 0.0
        %522 = vmatprep.subr.mxu0 0.0
        %523 = vmatpush1.msra.mxu0 0.0
        %524 = vmatprep.subr.mxu0 0.0
        %525 = vmatpush1.msra.mxu0 0.0
        %526 = vmatprep.subr.mxu0 0.0
        %527 = vmatpush1.msra.mxu0 0.0
        %528 = vmatprep.subr.mxu0 0.0
        %529 = vmatpush1.msra.mxu0 %v490
        %530 = vmatprep.subr.mxu0 0.0
        %531 = vmatpush1.msra.mxu0 %v489
        %532 = vmatprep.subr.mxu0 0.0
        %533 = vmatpush1.msra.mxu0 %v488
        %534 = vmatprep.subr.mxu0 0.0
        %535 = vmatpush1.msra.mxu0 %v487
        %536 = vmatprep.subr.mxu0 0.0
        %537 = vmatpush2.msra.mxu0 0.0
        %538 = vmatprep.subr.mxu0 0.0
        %539 = vmatpush2.msra.mxu0 0.0
        %540 = vmatprep.subr.mxu0 0.0
        %541 = vmatpush2.msra.mxu0 0.0
        %542 = vmatprep.subr.mxu0 0.0
        %543 = vmatpush2.msra.mxu0 0.0
        %544 = vmatprep.subr.mxu0 0.0
        %545 = vmatpush2.msra.mxu0 0.0
        %546 = vmatprep.subr.mxu0 0.0
        %547 = vmatpush2.msra.mxu0 0.0
        %548 = vmatprep.subr.mxu0 0.0
        %549 = vmatpush2.msra.mxu0 0.0
        %550 = vmatprep.subr.mxu0 0.0
        %551 = vmatpush2.msra.mxu0 0.0
        %552 = vmatprep.subr.mxu0 0.0
        %553 = vmatpush2.msra.mxu0 0.0
        %554 = vmatprep.subr.mxu0 0.0
        %555 = vmatpush2.msra.mxu0 0.0
        %556 = vmatprep.subr.mxu0 0.0
        %557 = vmatpush2.msra.mxu0 0.0
        %558 = vmatprep.subr.mxu0 0.0
        %559 = vmatpush2.msra.mxu0 0.0
        %560 = vmatprep.subr.mxu0 0.0
        %561 = vmatpush2.msra.mxu0 0.0
        %562 = vmatprep.subr.mxu0 0.0
        %563 = vmatpush2.msra.mxu0 0.0
        %564 = vmatprep.subr.mxu0 0.0
        %565 = vmatpush2.msra.mxu0 0.0
        %566 = vmatprep.subr.mxu0 0.0
        %567 = vmatpush2.msra.mxu0 0.0
        %568 = vmatprep.mubr.f32.mxu0 0.0
        %569 = vmatmul.mubr.f32.gmra.mxu0 %v499
        %v570 = vpop.f32.mrf.mxu0
        %v571 = vadd.f32 %v496, %v570
        %v572 = vpop.f32.mrf.mxu0
        %573 = vmatprep.mubr.f32.mxu0 0.0
        %574 = vmatmul.mubr.f32.gmra.mxu0 %v502
        %v575 = vpop.f32.mrf.mxu0
        %v576 = vadd.f32 %v496, %v575
        %v577 = vpop.f32.mrf.mxu0
        %578 = vdwg.mxu0
        %v579 = vmul.f32 %v571, 0.35355338
        %v580 = vmul.f32 %v576, 0.35355338
        %583 = vrot.lane.b32.xlu0 %v579, 120
        %v584 = vpop.permute.xlu0 %583
        %585 = vrot.lane.b32.xlu0 %v580, 120
        %v586 = vpop.permute.xlu0 %585
        %589 = vrot.lane.b32.xlu0 %v579, 112
        %v590 = vpop.permute.xlu0 %589
        %591 = vrot.lane.b32.xlu0 %v580, 112
        %v592 = vpop.permute.xlu0 %591
        %595 = vrot.lane.b32.xlu0 %v579, 104
        %v596 = vpop.permute.xlu0 %595
        %597 = vrot.lane.b32.xlu0 %v580, 104
        %v598 = vpop.permute.xlu0 %597
        %v601 = vcombine.low %v579, %v590
        %v602 = vcombine.high %v579, %v590
        %v604 = vunpack.c.l.s4 1983009808
        %v605 = vunpack.c.0.s8 %v604
        %v606 = vlaneseq
        %v607 = vshrl.u32 %v606, 7
        %v608 = vsub.s32 %v605, %v607
        %v609 = vrot.slane %v601, %v608
        %v611 = vunpack.c.l.s4 1983009808
        %v612 = vunpack.c.0.s8 %v611
        %v613 = vlaneseq
        %v614 = vshrl.u32 %v613, 7
        %v615 = vsub.s32 %v612, %v614
        %v616 = vrot.slane %v602, %v615
        %v617 = vcombine.low %v584, %v596
        %v618 = vcombine.high %v584, %v596
        %v620 = vunpack.c.l.s4 1983009808
        %v621 = vunpack.c.0.s8 %v620
        %v622 = vlaneseq
        %v623 = vshrl.u32 %v622, 7
        %v624 = vsub.s32 %v621, %v623
        %v625 = vrot.slane %v617, %v624
        %v627 = vunpack.c.l.s4 1983009808
        %v628 = vunpack.c.0.s8 %v627
        %v629 = vlaneseq
        %v630 = vshrl.u32 %v629, 7
        %v631 = vsub.s32 %v628, %v630
        %v632 = vrot.slane %v618, %v631
        %v633 = vcombine.low %v609, %v625
        %v634 = vcombine.high %v609, %v625
        %v636 = vunpack.c.l.s4 1934713408
        %v637 = vunpack.c.0.s8 %v636
        %v638 = vlaneseq
        %v639 = vshrl.u32 %v638, 7
        %v640 = vsub.s32 %v637, %v639
        %v641 = vrot.slane %v633, %v640
        %v643 = vunpack.c.l.s4 1934713408
        %v644 = vunpack.c.0.s8 %v643
        %v645 = vlaneseq
        %v646 = vshrl.u32 %v645, 7
        %v647 = vsub.s32 %v644, %v646
        %v648 = vrot.slane %v634, %v647
        %v649 = vcombine.low %v616, %v632
        %v650 = vcombine.high %v616, %v632
        %v652 = vunpack.c.l.s4 1934713408
        %v653 = vunpack.c.0.s8 %v652
        %v654 = vlaneseq
        %v655 = vshrl.u32 %v654, 7
        %v656 = vsub.s32 %v653, %v655
        %v657 = vrot.slane %v649, %v656
        %v659 = vunpack.c.l.s4 1934713408
        %v660 = vunpack.c.0.s8 %v659
        %v661 = vlaneseq
        %v662 = vshrl.u32 %v661, 7
        %v663 = vsub.s32 %v660, %v662
        %v664 = vrot.slane %v650, %v663
        %v665 = vcombine.high %v641, 0.0
        %v666 = vcombine.high %v648, 0.0
        %v667 = vcombine.high %v657, 0.0
        %v668 = vcombine.high %v664, 0.0
        %v669 = vcombine.low %v580, %v592
        %v670 = vcombine.high %v580, %v592
        %v672 = vunpack.c.l.s4 1983009808
        %v673 = vunpack.c.0.s8 %v672
        %v674 = vlaneseq
        %v675 = vshrl.u32 %v674, 7
        %v676 = vsub.s32 %v673, %v675
        %v677 = vrot.slane %v669, %v676
        %v679 = vunpack.c.l.s4 1983009808
        %v680 = vunpack.c.0.s8 %v679
        %v681 = vlaneseq
        %v682 = vshrl.u32 %v681, 7
        %v683 = vsub.s32 %v680, %v682
        %v684 = vrot.slane %v670, %v683
        %v685 = vcombine.low %v586, %v598
        %v686 = vcombine.high %v586, %v598
        %v688 = vunpack.c.l.s4 1983009808
        %v689 = vunpack.c.0.s8 %v688
        %v690 = vlaneseq
        %v691 = vshrl.u32 %v690, 7
        %v692 = vsub.s32 %v689, %v691
        %v693 = vrot.slane %v685, %v692
        %v695 = vunpack.c.l.s4 1983009808
        %v696 = vunpack.c.0.s8 %v695
        %v697 = vlaneseq
        %v698 = vshrl.u32 %v697, 7
        %v699 = vsub.s32 %v696, %v698
        %v700 = vrot.slane %v686, %v699
        %v701 = vcombine.low %v677, %v693
        %v702 = vcombine.high %v677, %v693
        %v704 = vunpack.c.l.s4 1934713408
        %v705 = vunpack.c.0.s8 %v704
        %v706 = vlaneseq
        %v707 = vshrl.u32 %v706, 7
        %v708 = vsub.s32 %v705, %v707
        %v709 = vrot.slane %v701, %v708
        %v711 = vunpack.c.l.s4 1934713408
        %v712 = vunpack.c.0.s8 %v711
        %v713 = vlaneseq
        %v714 = vshrl.u32 %v713, 7
        %v715 = vsub.s32 %v712, %v714
        %v716 = vrot.slane %v702, %v715
        %v717 = vcombine.low %v684, %v700
        %v718 = vcombine.high %v684, %v700
        %v720 = vunpack.c.l.s4 1934713408
        %v721 = vunpack.c.0.s8 %v720
        %v722 = vlaneseq
        %v723 = vshrl.u32 %v722, 7
        %v724 = vsub.s32 %v721, %v723
        %v725 = vrot.slane %v717, %v724
        %v727 = vunpack.c.l.s4 1934713408
        %v728 = vunpack.c.0.s8 %v727
        %v729 = vlaneseq
        %v730 = vshrl.u32 %v729, 7
        %v731 = vsub.s32 %v728, %v730
        %v732 = vrot.slane %v718, %v731
        %v733 = vcombine.high %v709, 0.0
        %v734 = vcombine.high %v716, 0.0
        %v735 = vcombine.high %v725, 0.0
        %v736 = vcombine.high %v732, 0.0
        %v737 = vcombine.low %v641, %v648
        %v739 = vunpack.c.l.s4 1983009808
        %v740 = vunpack.c.0.s8 %v739
        %v741 = vlaneseq
        %v742 = vshrl.u32 %v741, 7
        %v743 = vsub.s32 %v740, %v742
        %v744 = vrot.slane %v737, %v743
        %v745 = vcombine.low %v665, %v666
        %v747 = vunpack.c.l.s4 1983009808
        %v748 = vunpack.c.0.s8 %v747
        %v749 = vlaneseq
        %v750 = vshrl.u32 %v749, 7
        %v751 = vsub.s32 %v748, %v750
        %v752 = vrot.slane %v745, %v751
        %v753 = vcombine.low %v657, %v664
        %v755 = vunpack.c.l.s4 1983009808
        %v756 = vunpack.c.0.s8 %v755
        %v757 = vlaneseq
        %v758 = vshrl.u32 %v757, 7
        %v759 = vsub.s32 %v756, %v758
        %v760 = vrot.slane %v753, %v759
        %v761 = vcombine.low %v667, %v668
        %v763 = vunpack.c.l.s4 1983009808
        %v764 = vunpack.c.0.s8 %v763
        %v765 = vlaneseq
        %v766 = vshrl.u32 %v765, 7
        %v767 = vsub.s32 %v764, %v766
        %v768 = vrot.slane %v761, %v767
        %v769 = vcombine.low %v744, %v752
        %v770 = vcombine.high %v744, %v752
        %v772 = vunpack.c.l.s4 1934713408
        %v773 = vunpack.c.0.s8 %v772
        %v774 = vlaneseq
        %v775 = vshrl.u32 %v774, 7
        %v776 = vsub.s32 %v773, %v775
        %v777 = vrot.slane %v769, %v776
        %v779 = vunpack.c.l.s4 1934713408
        %v780 = vunpack.c.0.s8 %v779
        %v781 = vlaneseq
        %v782 = vshrl.u32 %v781, 7
        %v783 = vsub.s32 %v780, %v782
        %v784 = vrot.slane %v770, %v783
        %v785 = vcombine.low %v760, %v768
        %v786 = vcombine.high %v760, %v768
        %v788 = vunpack.c.l.s4 1934713408
        %v789 = vunpack.c.0.s8 %v788
        %v790 = vlaneseq
        %v791 = vshrl.u32 %v790, 7
        %v792 = vsub.s32 %v789, %v791
        %v793 = vrot.slane %v785, %v792
        %v795 = vunpack.c.l.s4 1934713408
        %v796 = vunpack.c.0.s8 %v795
        %v797 = vlaneseq
        %v798 = vshrl.u32 %v797, 7
        %v799 = vsub.s32 %v796, %v798
        %v800 = vrot.slane %v786, %v799
        %v801 = vcombine.low %v777, %v793
        %v802 = vcombine.high %v777, %v793
        %v803 = vcombine.low %v784, %v800
        %v804 = vcombine.high %v784, %v800
        %v805 = vcombine.low %v709, %v716
        %v807 = vunpack.c.l.s4 1983009808
        %v808 = vunpack.c.0.s8 %v807
        %v809 = vlaneseq
        %v810 = vshrl.u32 %v809, 7
        %v811 = vsub.s32 %v808, %v810
        %v812 = vrot.slane %v805, %v811
        %v813 = vcombine.low %v733, %v734
        %v815 = vunpack.c.l.s4 1983009808
        %v816 = vunpack.c.0.s8 %v815
        %v817 = vlaneseq
        %v818 = vshrl.u32 %v817, 7
        %v819 = vsub.s32 %v816, %v818
        %v820 = vrot.slane %v813, %v819
        %v821 = vcombine.low %v725, %v732
        %v823 = vunpack.c.l.s4 1983009808
        %v824 = vunpack.c.0.s8 %v823
        %v825 = vlaneseq
        %v826 = vshrl.u32 %v825, 7
        %v827 = vsub.s32 %v824, %v826
        %v828 = vrot.slane %v821, %v827
        %v829 = vcombine.low %v735, %v736
        %v831 = vunpack.c.l.s4 1983009808
        %v832 = vunpack.c.0.s8 %v831
        %v833 = vlaneseq
        %v834 = vshrl.u32 %v833, 7
        %v835 = vsub.s32 %v832, %v834
        %v836 = vrot.slane %v829, %v835
        %v837 = vcombine.low %v812, %v820
        %v838 = vcombine.high %v812, %v820
        %v840 = vunpack.c.l.s4 1934713408
        %v841 = vunpack.c.0.s8 %v840
        %v842 = vlaneseq
        %v843 = vshrl.u32 %v842, 7
        %v844 = vsub.s32 %v841, %v843
        %v845 = vrot.slane %v837, %v844
        %v847 = vunpack.c.l.s4 1934713408
        %v848 = vunpack.c.0.s8 %v847
        %v849 = vlaneseq
        %v850 = vshrl.u32 %v849, 7
        %v851 = vsub.s32 %v848, %v850
        %v852 = vrot.slane %v838, %v851
        %v853 = vcombine.low %v828, %v836
        %v854 = vcombine.high %v828, %v836
        %v856 = vunpack.c.l.s4 1934713408
        %v857 = vunpack.c.0.s8 %v856
        %v858 = vlaneseq
        %v859 = vshrl.u32 %v858, 7
        %v860 = vsub.s32 %v857, %v859
        %v861 = vrot.slane %v853, %v860
        %v863 = vunpack.c.l.s4 1934713408
        %v864 = vunpack.c.0.s8 %v863
        %v865 = vlaneseq
        %v866 = vshrl.u32 %v865, 7
        %v867 = vsub.s32 %v864, %v866
        %v868 = vrot.slane %v854, %v867
        %v869 = vcombine.low %v845, %v861
        %v870 = vcombine.high %v845, %v861
        %v871 = vcombine.low %v852, %v868
        %v872 = vcombine.high %v852, %v868
        %875 = vrot.lane.b32.xlu0 %v571, 120
        %v876 = vpop.permute.xlu0 %875
        %877 = vrot.lane.b32.xlu0 %v576, 120
        %v878 = vpop.permute.xlu0 %877
        %879 = vrot.lane.b32.xlu0 %v571, 112
        %v880 = vpop.permute.xlu0 %879
        %881 = vrot.lane.b32.xlu0 %v576, 112
        %v882 = vpop.permute.xlu0 %881
        %883 = vrot.lane.b32.xlu0 %v571, 104
        %v884 = vpop.permute.xlu0 %883
        %885 = vrot.lane.b32.xlu0 %v576, 104
        %v886 = vpop.permute.xlu0 %885
        %887 = vrot.lane.b32.xlu0 %v571, 96
        %v888 = vpop.permute.xlu0 %887
        %889 = vrot.lane.b32.xlu0 %v576, 96
        %v890 = vpop.permute.xlu0 %889
        %891 = vrot.lane.b32.xlu0 %v876, 96
        %v892 = vpop.permute.xlu0 %891
        %893 = vrot.lane.b32.xlu0 %v878, 96
        %v894 = vpop.permute.xlu0 %893
        %895 = vrot.lane.b32.xlu0 %v880, 96
        %v896 = vpop.permute.xlu0 %895
        %897 = vrot.lane.b32.xlu0 %v882, 96
        %v898 = vpop.permute.xlu0 %897
        %899 = vrot.lane.b32.xlu0 %v884, 96
        %v900 = vpop.permute.xlu0 %899
        %901 = vrot.lane.b32.xlu0 %v886, 96
        %v902 = vpop.permute.xlu0 %901
        %v911 = vcombine.low %v888, %v896
        %v912 = vcombine.high %v888, %v896
        %v914 = vunpack.c.l.s4 1983009808
        %v915 = vunpack.c.0.s8 %v914
        %v916 = vlaneseq
        %v917 = vshrl.u32 %v916, 7
        %v918 = vsub.s32 %v915, %v917
        %v919 = vrot.slane %v911, %v918
        %v921 = vunpack.c.l.s4 1983009808
        %v922 = vunpack.c.0.s8 %v921
        %v923 = vlaneseq
        %v924 = vshrl.u32 %v923, 7
        %v925 = vsub.s32 %v922, %v924
        %v926 = vrot.slane %v912, %v925
        %v927 = vcombine.low %v892, %v900
        %v928 = vcombine.high %v892, %v900
        %v930 = vunpack.c.l.s4 1983009808
        %v931 = vunpack.c.0.s8 %v930
        %v932 = vlaneseq
        %v933 = vshrl.u32 %v932, 7
        %v934 = vsub.s32 %v931, %v933
        %v935 = vrot.slane %v927, %v934
        %v937 = vunpack.c.l.s4 1983009808
        %v938 = vunpack.c.0.s8 %v937
        %v939 = vlaneseq
        %v940 = vshrl.u32 %v939, 7
        %v941 = vsub.s32 %v938, %v940
        %v942 = vrot.slane %v928, %v941
        %v943 = vcombine.low %v919, %v935
        %v944 = vcombine.high %v919, %v935
        %v946 = vunpack.c.l.s4 1934713408
        %v947 = vunpack.c.0.s8 %v946
        %v948 = vlaneseq
        %v949 = vshrl.u32 %v948, 7
        %v950 = vsub.s32 %v947, %v949
        %v951 = vrot.slane %v943, %v950
        %v953 = vunpack.c.l.s4 1934713408
        %v954 = vunpack.c.0.s8 %v953
        %v955 = vlaneseq
        %v956 = vshrl.u32 %v955, 7
        %v957 = vsub.s32 %v954, %v956
        %v958 = vrot.slane %v944, %v957
        %v959 = vcombine.low %v926, %v942
        %v960 = vcombine.high %v926, %v942
        %v962 = vunpack.c.l.s4 1934713408
        %v963 = vunpack.c.0.s8 %v962
        %v964 = vlaneseq
        %v965 = vshrl.u32 %v964, 7
        %v966 = vsub.s32 %v963, %v965
        %v967 = vrot.slane %v959, %v966
        %v969 = vunpack.c.l.s4 1934713408
        %v970 = vunpack.c.0.s8 %v969
        %v971 = vlaneseq
        %v972 = vshrl.u32 %v971, 7
        %v973 = vsub.s32 %v970, %v972
        %v974 = vrot.slane %v960, %v973
        %v975 = vcombine.high %v951, 0.0
        %v976 = vcombine.high %v958, 0.0
        %v977 = vcombine.high %v967, 0.0
        %v978 = vcombine.high %v974, 0.0
        %v979 = vcombine.low %v890, %v898
        %v980 = vcombine.high %v890, %v898
        %v982 = vunpack.c.l.s4 1983009808
        %v983 = vunpack.c.0.s8 %v982
        %v984 = vlaneseq
        %v985 = vshrl.u32 %v984, 7
        %v986 = vsub.s32 %v983, %v985
        %v987 = vrot.slane %v979, %v986
        %v989 = vunpack.c.l.s4 1983009808
        %v990 = vunpack.c.0.s8 %v989
        %v991 = vlaneseq
        %v992 = vshrl.u32 %v991, 7
        %v993 = vsub.s32 %v990, %v992
        %v994 = vrot.slane %v980, %v993
        %v995 = vcombine.low %v894, %v902
        %v996 = vcombine.high %v894, %v902
        %v998 = vunpack.c.l.s4 1983009808
        %v999 = vunpack.c.0.s8 %v998
        %v1000 = vlaneseq
        %v1001 = vshrl.u32 %v1000, 7
        %v1002 = vsub.s32 %v999, %v1001
        %v1003 = vrot.slane %v995, %v1002
        %v1005 = vunpack.c.l.s4 1983009808
        %v1006 = vunpack.c.0.s8 %v1005
        %v1007 = vlaneseq
        %v1008 = vshrl.u32 %v1007, 7
        %v1009 = vsub.s32 %v1006, %v1008
        %v1010 = vrot.slane %v996, %v1009
        %v1011 = vcombine.low %v987, %v1003
        %v1012 = vcombine.high %v987, %v1003
        %v1014 = vunpack.c.l.s4 1934713408
        %v1015 = vunpack.c.0.s8 %v1014
        %v1016 = vlaneseq
        %v1017 = vshrl.u32 %v1016, 7
        %v1018 = vsub.s32 %v1015, %v1017
        %v1019 = vrot.slane %v1011, %v1018
        %v1021 = vunpack.c.l.s4 1934713408
        %v1022 = vunpack.c.0.s8 %v1021
        %v1023 = vlaneseq
        %v1024 = vshrl.u32 %v1023, 7
        %v1025 = vsub.s32 %v1022, %v1024
        %v1026 = vrot.slane %v1012, %v1025
        %v1027 = vcombine.low %v994, %v1010
        %v1028 = vcombine.high %v994, %v1010
        %v1030 = vunpack.c.l.s4 1934713408
        %v1031 = vunpack.c.0.s8 %v1030
        %v1032 = vlaneseq
        %v1033 = vshrl.u32 %v1032, 7
        %v1034 = vsub.s32 %v1031, %v1033
        %v1035 = vrot.slane %v1027, %v1034
        %v1037 = vunpack.c.l.s4 1934713408
        %v1038 = vunpack.c.0.s8 %v1037
        %v1039 = vlaneseq
        %v1040 = vshrl.u32 %v1039, 7
        %v1041 = vsub.s32 %v1038, %v1040
        %v1042 = vrot.slane %v1028, %v1041
        %v1043 = vcombine.high %v1019, 0.0
        %v1044 = vcombine.high %v1026, 0.0
        %v1045 = vcombine.high %v1035, 0.0
        %v1046 = vcombine.high %v1042, 0.0
        %v1047 = vcombine.low %v951, %v958
        %v1049 = vunpack.c.l.s4 1983009808
        %v1050 = vunpack.c.0.s8 %v1049
        %v1051 = vlaneseq
        %v1052 = vshrl.u32 %v1051, 7
        %v1053 = vsub.s32 %v1050, %v1052
        %v1054 = vrot.slane %v1047, %v1053
        %v1055 = vcombine.low %v975, %v976
        %v1057 = vunpack.c.l.s4 1983009808
        %v1058 = vunpack.c.0.s8 %v1057
        %v1059 = vlaneseq
        %v1060 = vshrl.u32 %v1059, 7
        %v1061 = vsub.s32 %v1058, %v1060
        %v1062 = vrot.slane %v1055, %v1061
        %v1063 = vcombine.low %v967, %v974
        %v1065 = vunpack.c.l.s4 1983009808
        %v1066 = vunpack.c.0.s8 %v1065
        %v1067 = vlaneseq
        %v1068 = vshrl.u32 %v1067, 7
        %v1069 = vsub.s32 %v1066, %v1068
        %v1070 = vrot.slane %v1063, %v1069
        %v1071 = vcombine.low %v977, %v978
        %v1073 = vunpack.c.l.s4 1983009808
        %v1074 = vunpack.c.0.s8 %v1073
        %v1075 = vlaneseq
        %v1076 = vshrl.u32 %v1075, 7
        %v1077 = vsub.s32 %v1074, %v1076
        %v1078 = vrot.slane %v1071, %v1077
        %v1079 = vcombine.low %v1054, %v1062
        %v1080 = vcombine.high %v1054, %v1062
        %v1082 = vunpack.c.l.s4 1934713408
        %v1083 = vunpack.c.0.s8 %v1082
        %v1084 = vlaneseq
        %v1085 = vshrl.u32 %v1084, 7
        %v1086 = vsub.s32 %v1083, %v1085
        %v1087 = vrot.slane %v1079, %v1086
        %v1089 = vunpack.c.l.s4 1934713408
        %v1090 = vunpack.c.0.s8 %v1089
        %v1091 = vlaneseq
        %v1092 = vshrl.u32 %v1091, 7
        %v1093 = vsub.s32 %v1090, %v1092
        %v1094 = vrot.slane %v1080, %v1093
        %v1095 = vcombine.low %v1070, %v1078
        %v1096 = vcombine.high %v1070, %v1078
        %v1098 = vunpack.c.l.s4 1934713408
        %v1099 = vunpack.c.0.s8 %v1098
        %v1100 = vlaneseq
        %v1101 = vshrl.u32 %v1100, 7
        %v1102 = vsub.s32 %v1099, %v1101
        %v1103 = vrot.slane %v1095, %v1102
        %v1105 = vunpack.c.l.s4 1934713408
        %v1106 = vunpack.c.0.s8 %v1105
        %v1107 = vlaneseq
        %v1108 = vshrl.u32 %v1107, 7
        %v1109 = vsub.s32 %v1106, %v1108
        %v1110 = vrot.slane %v1096, %v1109
        %v1111 = vcombine.low %v1087, %v1103
        %v1112 = vcombine.high %v1087, %v1103
        %v1113 = vcombine.low %v1094, %v1110
        %v1114 = vcombine.high %v1094, %v1110
        %v1115 = vcombine.low %v1019, %v1026
        %v1117 = vunpack.c.l.s4 1983009808
        %v1118 = vunpack.c.0.s8 %v1117
        %v1119 = vlaneseq
        %v1120 = vshrl.u32 %v1119, 7
        %v1121 = vsub.s32 %v1118, %v1120
        %v1122 = vrot.slane %v1115, %v1121
        %v1123 = vcombine.low %v1043, %v1044
        %v1125 = vunpack.c.l.s4 1983009808
        %v1126 = vunpack.c.0.s8 %v1125
        %v1127 = vlaneseq
        %v1128 = vshrl.u32 %v1127, 7
        %v1129 = vsub.s32 %v1126, %v1128
        %v1130 = vrot.slane %v1123, %v1129
        %v1131 = vcombine.low %v1035, %v1042
        %v1133 = vunpack.c.l.s4 1983009808
        %v1134 = vunpack.c.0.s8 %v1133
        %v1135 = vlaneseq
        %v1136 = vshrl.u32 %v1135, 7
        %v1137 = vsub.s32 %v1134, %v1136
        %v1138 = vrot.slane %v1131, %v1137
        %v1139 = vcombine.low %v1045, %v1046
        %v1141 = vunpack.c.l.s4 1983009808
        %v1142 = vunpack.c.0.s8 %v1141
        %v1143 = vlaneseq
        %v1144 = vshrl.u32 %v1143, 7
        %v1145 = vsub.s32 %v1142, %v1144
        %v1146 = vrot.slane %v1139, %v1145
        %v1147 = vcombine.low %v1122, %v1130
        %v1148 = vcombine.high %v1122, %v1130
        %v1150 = vunpack.c.l.s4 1934713408
        %v1151 = vunpack.c.0.s8 %v1150
        %v1152 = vlaneseq
        %v1153 = vshrl.u32 %v1152, 7
        %v1154 = vsub.s32 %v1151, %v1153
        %v1155 = vrot.slane %v1147, %v1154
        %v1157 = vunpack.c.l.s4 1934713408
        %v1158 = vunpack.c.0.s8 %v1157
        %v1159 = vlaneseq
        %v1160 = vshrl.u32 %v1159, 7
        %v1161 = vsub.s32 %v1158, %v1160
        %v1162 = vrot.slane %v1148, %v1161
        %v1163 = vcombine.low %v1138, %v1146
        %v1164 = vcombine.high %v1138, %v1146
        %v1166 = vunpack.c.l.s4 1934713408
        %v1167 = vunpack.c.0.s8 %v1166
        %v1168 = vlaneseq
        %v1169 = vshrl.u32 %v1168, 7
        %v1170 = vsub.s32 %v1167, %v1169
        %v1171 = vrot.slane %v1163, %v1170
        %v1173 = vunpack.c.l.s4 1934713408
        %v1174 = vunpack.c.0.s8 %v1173
        %v1175 = vlaneseq
        %v1176 = vshrl.u32 %v1175, 7
        %v1177 = vsub.s32 %v1174, %v1176
        %v1178 = vrot.slane %v1164, %v1177
        %v1179 = vcombine.low %v1155, %v1171
        %v1180 = vcombine.high %v1155, %v1171
        %v1181 = vcombine.low %v1162, %v1178
        %v1182 = vcombine.high %v1162, %v1178
        %1183 = vrot.lane.b32.xlu0 %v571, 64
        %v1184 = vpop.permute.xlu0 %1183
        %1185 = vrot.lane.b32.xlu0 %v576, 64
        %v1186 = vpop.permute.xlu0 %1185
        %1187 = vrot.lane.b32.xlu0 %v876, 64
        %v1188 = vpop.permute.xlu0 %1187
        %1189 = vrot.lane.b32.xlu0 %v878, 64
        %v1190 = vpop.permute.xlu0 %1189
        %1191 = vrot.lane.b32.xlu0 %v880, 64
        %v1192 = vpop.permute.xlu0 %1191
        %1193 = vrot.lane.b32.xlu0 %v882, 64
        %v1194 = vpop.permute.xlu0 %1193
        %1195 = vrot.lane.b32.xlu0 %v884, 64
        %v1196 = vpop.permute.xlu0 %1195
        %1197 = vrot.lane.b32.xlu0 %v886, 64
        %v1198 = vpop.permute.xlu0 %1197
        %v1207 = vcombine.low %v1184, %v1192
        %v1208 = vcombine.high %v1184, %v1192
        %v1210 = vunpack.c.l.s4 1983009808
        %v1211 = vunpack.c.0.s8 %v1210
        %v1212 = vlaneseq
        %v1213 = vshrl.u32 %v1212, 7
        %v1214 = vsub.s32 %v1211, %v1213
        %v1215 = vrot.slane %v1207, %v1214
        %v1217 = vunpack.c.l.s4 1983009808
        %v1218 = vunpack.c.0.s8 %v1217
        %v1219 = vlaneseq
        %v1220 = vshrl.u32 %v1219, 7
        %v1221 = vsub.s32 %v1218, %v1220
        %v1222 = vrot.slane %v1208, %v1221
        %v1223 = vcombine.low %v1188, %v1196
        %v1224 = vcombine.high %v1188, %v1196
        %v1226 = vunpack.c.l.s4 1983009808
        %v1227 = vunpack.c.0.s8 %v1226
        %v1228 = vlaneseq
        %v1229 = vshrl.u32 %v1228, 7
        %v1230 = vsub.s32 %v1227, %v1229
        %v1231 = vrot.slane %v1223, %v1230
        %v1233 = vunpack.c.l.s4 1983009808
        %v1234 = vunpack.c.0.s8 %v1233
        %v1235 = vlaneseq
        %v1236 = vshrl.u32 %v1235, 7
        %v1237 = vsub.s32 %v1234, %v1236
        %v1238 = vrot.slane %v1224, %v1237
        %v1239 = vcombine.low %v1215, %v1231
        %v1240 = vcombine.high %v1215, %v1231
        %v1242 = vunpack.c.l.s4 1934713408
        %v1243 = vunpack.c.0.s8 %v1242
        %v1244 = vlaneseq
        %v1245 = vshrl.u32 %v1244, 7
        %v1246 = vsub.s32 %v1243, %v1245
        %v1247 = vrot.slane %v1239, %v1246
        %v1249 = vunpack.c.l.s4 1934713408
        %v1250 = vunpack.c.0.s8 %v1249
        %v1251 = vlaneseq
        %v1252 = vshrl.u32 %v1251, 7
        %v1253 = vsub.s32 %v1250, %v1252
        %v1254 = vrot.slane %v1240, %v1253
        %v1255 = vcombine.low %v1222, %v1238
        %v1256 = vcombine.high %v1222, %v1238
        %v1258 = vunpack.c.l.s4 1934713408
        %v1259 = vunpack.c.0.s8 %v1258
        %v1260 = vlaneseq
        %v1261 = vshrl.u32 %v1260, 7
        %v1262 = vsub.s32 %v1259, %v1261
        %v1263 = vrot.slane %v1255, %v1262
        %v1265 = vunpack.c.l.s4 1934713408
        %v1266 = vunpack.c.0.s8 %v1265
        %v1267 = vlaneseq
        %v1268 = vshrl.u32 %v1267, 7
        %v1269 = vsub.s32 %v1266, %v1268
        %v1270 = vrot.slane %v1256, %v1269
        %v1271 = vcombine.high %v1247, 0.0
        %v1272 = vcombine.high %v1254, 0.0
        %v1273 = vcombine.high %v1263, 0.0
        %v1274 = vcombine.high %v1270, 0.0
        %v1275 = vcombine.low %v1186, %v1194
        %v1276 = vcombine.high %v1186, %v1194
        %v1278 = vunpack.c.l.s4 1983009808
        %v1279 = vunpack.c.0.s8 %v1278
        %v1280 = vlaneseq
        %v1281 = vshrl.u32 %v1280, 7
        %v1282 = vsub.s32 %v1279, %v1281
        %v1283 = vrot.slane %v1275, %v1282
        %v1285 = vunpack.c.l.s4 1983009808
        %v1286 = vunpack.c.0.s8 %v1285
        %v1287 = vlaneseq
        %v1288 = vshrl.u32 %v1287, 7
        %v1289 = vsub.s32 %v1286, %v1288
        %v1290 = vrot.slane %v1276, %v1289
        %v1291 = vcombine.low %v1190, %v1198
        %v1292 = vcombine.high %v1190, %v1198
        %v1294 = vunpack.c.l.s4 1983009808
        %v1295 = vunpack.c.0.s8 %v1294
        %v1296 = vlaneseq
        %v1297 = vshrl.u32 %v1296, 7
        %v1298 = vsub.s32 %v1295, %v1297
        %v1299 = vrot.slane %v1291, %v1298
        %v1301 = vunpack.c.l.s4 1983009808
        %v1302 = vunpack.c.0.s8 %v1301
        %v1303 = vlaneseq
        %v1304 = vshrl.u32 %v1303, 7
        %v1305 = vsub.s32 %v1302, %v1304
        %v1306 = vrot.slane %v1292, %v1305
        %v1307 = vcombine.low %v1283, %v1299
        %v1308 = vcombine.high %v1283, %v1299
        %v1310 = vunpack.c.l.s4 1934713408
        %v1311 = vunpack.c.0.s8 %v1310
        %v1312 = vlaneseq
        %v1313 = vshrl.u32 %v1312, 7
        %v1314 = vsub.s32 %v1311, %v1313
        %v1315 = vrot.slane %v1307, %v1314
        %v1317 = vunpack.c.l.s4 1934713408
        %v1318 = vunpack.c.0.s8 %v1317
        %v1319 = vlaneseq
        %v1320 = vshrl.u32 %v1319, 7
        %v1321 = vsub.s32 %v1318, %v1320
        %v1322 = vrot.slane %v1308, %v1321
        %v1323 = vcombine.low %v1290, %v1306
        %v1324 = vcombine.high %v1290, %v1306
        %v1326 = vunpack.c.l.s4 1934713408
        %v1327 = vunpack.c.0.s8 %v1326
        %v1328 = vlaneseq
        %v1329 = vshrl.u32 %v1328, 7
        %v1330 = vsub.s32 %v1327, %v1329
        %v1331 = vrot.slane %v1323, %v1330
        %v1333 = vunpack.c.l.s4 1934713408
        %v1334 = vunpack.c.0.s8 %v1333
        %v1335 = vlaneseq
        %v1336 = vshrl.u32 %v1335, 7
        %v1337 = vsub.s32 %v1334, %v1336
        %v1338 = vrot.slane %v1324, %v1337
        %v1339 = vcombine.high %v1315, 0.0
        %v1340 = vcombine.high %v1322, 0.0
        %v1341 = vcombine.high %v1331, 0.0
        %v1342 = vcombine.high %v1338, 0.0
        %v1343 = vcombine.low %v1247, %v1254
        %v1345 = vunpack.c.l.s4 1983009808
        %v1346 = vunpack.c.0.s8 %v1345
        %v1347 = vlaneseq
        %v1348 = vshrl.u32 %v1347, 7
        %v1349 = vsub.s32 %v1346, %v1348
        %v1350 = vrot.slane %v1343, %v1349
        %v1351 = vcombine.low %v1271, %v1272
        %v1353 = vunpack.c.l.s4 1983009808
        %v1354 = vunpack.c.0.s8 %v1353
        %v1355 = vlaneseq
        %v1356 = vshrl.u32 %v1355, 7
        %v1357 = vsub.s32 %v1354, %v1356
        %v1358 = vrot.slane %v1351, %v1357
        %v1359 = vcombine.low %v1263, %v1270
        %v1361 = vunpack.c.l.s4 1983009808
        %v1362 = vunpack.c.0.s8 %v1361
        %v1363 = vlaneseq
        %v1364 = vshrl.u32 %v1363, 7
        %v1365 = vsub.s32 %v1362, %v1364
        %v1366 = vrot.slane %v1359, %v1365
        %v1367 = vcombine.low %v1273, %v1274
        %v1369 = vunpack.c.l.s4 1983009808
        %v1370 = vunpack.c.0.s8 %v1369
        %v1371 = vlaneseq
        %v1372 = vshrl.u32 %v1371, 7
        %v1373 = vsub.s32 %v1370, %v1372
        %v1374 = vrot.slane %v1367, %v1373
        %v1375 = vcombine.low %v1350, %v1358
        %v1376 = vcombine.high %v1350, %v1358
        %v1378 = vunpack.c.l.s4 1934713408
        %v1379 = vunpack.c.0.s8 %v1378
        %v1380 = vlaneseq
        %v1381 = vshrl.u32 %v1380, 7
        %v1382 = vsub.s32 %v1379, %v1381
        %v1383 = vrot.slane %v1375, %v1382
        %v1385 = vunpack.c.l.s4 1934713408
        %v1386 = vunpack.c.0.s8 %v1385
        %v1387 = vlaneseq
        %v1388 = vshrl.u32 %v1387, 7
        %v1389 = vsub.s32 %v1386, %v1388
        %v1390 = vrot.slane %v1376, %v1389
        %v1391 = vcombine.low %v1366, %v1374
        %v1392 = vcombine.high %v1366, %v1374
        %v1394 = vunpack.c.l.s4 1934713408
        %v1395 = vunpack.c.0.s8 %v1394
        %v1396 = vlaneseq
        %v1397 = vshrl.u32 %v1396, 7
        %v1398 = vsub.s32 %v1395, %v1397
        %v1399 = vrot.slane %v1391, %v1398
        %v1401 = vunpack.c.l.s4 1934713408
        %v1402 = vunpack.c.0.s8 %v1401
        %v1403 = vlaneseq
        %v1404 = vshrl.u32 %v1403, 7
        %v1405 = vsub.s32 %v1402, %v1404
        %v1406 = vrot.slane %v1392, %v1405
        %v1407 = vcombine.low %v1383, %v1399
        %v1408 = vcombine.high %v1383, %v1399
        %v1409 = vcombine.low %v1390, %v1406
        %v1410 = vcombine.high %v1390, %v1406
        %v1411 = vcombine.low %v1315, %v1322
        %v1413 = vunpack.c.l.s4 1983009808
        %v1414 = vunpack.c.0.s8 %v1413
        %v1415 = vlaneseq
        %v1416 = vshrl.u32 %v1415, 7
        %v1417 = vsub.s32 %v1414, %v1416
        %v1418 = vrot.slane %v1411, %v1417
        %v1419 = vcombine.low %v1339, %v1340
        %v1421 = vunpack.c.l.s4 1983009808
        %v1422 = vunpack.c.0.s8 %v1421
        %v1423 = vlaneseq
        %v1424 = vshrl.u32 %v1423, 7
        %v1425 = vsub.s32 %v1422, %v1424
        %v1426 = vrot.slane %v1419, %v1425
        %v1427 = vcombine.low %v1331, %v1338
        %v1429 = vunpack.c.l.s4 1983009808
        %v1430 = vunpack.c.0.s8 %v1429
        %v1431 = vlaneseq
        %v1432 = vshrl.u32 %v1431, 7
        %v1433 = vsub.s32 %v1430, %v1432
        %v1434 = vrot.slane %v1427, %v1433
        %v1435 = vcombine.low %v1341, %v1342
        %v1437 = vunpack.c.l.s4 1983009808
        %v1438 = vunpack.c.0.s8 %v1437
        %v1439 = vlaneseq
        %v1440 = vshrl.u32 %v1439, 7
        %v1441 = vsub.s32 %v1438, %v1440
        %v1442 = vrot.slane %v1435, %v1441
        %v1443 = vcombine.low %v1418, %v1426
        %v1444 = vcombine.high %v1418, %v1426
        %v1446 = vunpack.c.l.s4 1934713408
        %v1447 = vunpack.c.0.s8 %v1446
        %v1448 = vlaneseq
        %v1449 = vshrl.u32 %v1448, 7
        %v1450 = vsub.s32 %v1447, %v1449
        %v1451 = vrot.slane %v1443, %v1450
        %v1453 = vunpack.c.l.s4 1934713408
        %v1454 = vunpack.c.0.s8 %v1453
        %v1455 = vlaneseq
        %v1456 = vshrl.u32 %v1455, 7
        %v1457 = vsub.s32 %v1454, %v1456
        %v1458 = vrot.slane %v1444, %v1457
        %v1459 = vcombine.low %v1434, %v1442
        %v1460 = vcombine.high %v1434, %v1442
        %v1462 = vunpack.c.l.s4 1934713408
        %v1463 = vunpack.c.0.s8 %v1462
        %v1464 = vlaneseq
        %v1465 = vshrl.u32 %v1464, 7
        %v1466 = vsub.s32 %v1463, %v1465
        %v1467 = vrot.slane %v1459, %v1466
        %v1469 = vunpack.c.l.s4 1934713408
        %v1470 = vunpack.c.0.s8 %v1469
        %v1471 = vlaneseq
        %v1472 = vshrl.u32 %v1471, 7
        %v1473 = vsub.s32 %v1470, %v1472
        %v1474 = vrot.slane %v1460, %v1473
        %v1475 = vcombine.low %v1451, %v1467
        %v1476 = vcombine.high %v1451, %v1467
        %v1477 = vcombine.low %v1458, %v1474
        %v1478 = vcombine.high %v1458, %v1474
        %vm1479 = vcmask 64512
        %v1481 = vsel %vm1479, %v801, 0
        %v1484 = vsel %vm1479, %v869, 0
        %v1487 = vsel %vm1479, %v1111, 0
        %v1490 = vsel %vm1479, %v1179, 0
        %1492 = vmatprep.subr.mxu0 0.0
        %1493 = vmatpush1.xpose.msra.mxu0 0.0
        %1494 = vmatprep.subr.mxu0 0.0
        %1495 = vmatpush1.xpose.msra.mxu0 0.0
        %1496 = vmatprep.subr.mxu0 0.0
        %1497 = vmatpush1.xpose.msra.mxu0 0.0
        %1498 = vmatprep.subr.mxu0 0.0
        %1499 = vmatpush1.xpose.msra.mxu0 0.0
        %1500 = vmatprep.subr.mxu0 0.0
        %1501 = vmatpush1.xpose.msra.mxu0 0.0
        %1502 = vmatprep.subr.mxu0 0.0
        %1503 = vmatpush1.xpose.msra.mxu0 0.0
        %1504 = vmatprep.subr.mxu0 0.0
        %1505 = vmatpush1.xpose.msra.mxu0 0.0
        %1506 = vmatprep.subr.mxu0 0.0
        %1507 = vmatpush1.xpose.msra.mxu0 0.0
        %1508 = vmatprep.subr.mxu0 0.0
        %1509 = vmatpush1.xpose.msra.mxu0 0.0
        %1510 = vmatprep.subr.mxu0 0.0
        %1511 = vmatpush1.xpose.msra.mxu0 0.0
        %1512 = vmatprep.subr.mxu0 0.0
        %1513 = vmatpush1.xpose.msra.mxu0 0.0
        %1514 = vmatprep.subr.mxu0 0.0
        %1515 = vmatpush1.xpose.msra.mxu0 0.0
        %1516 = vmatprep.subr.mxu0 0.0
        %1517 = vmatpush1.xpose.msra.mxu0 0.0
        %1518 = vmatprep.subr.mxu0 0.0
        %1519 = vmatpush1.xpose.msra.mxu0 0.0
        %1520 = vmatprep.subr.mxu0 0.0
        %1521 = vmatpush1.xpose.msra.mxu0 %v1490
        %1522 = vmatprep.subr.mxu0 0.0
        %1523 = vmatpush1.xpose.msra.mxu0 %v1487
        %1524 = vmatprep.subr.mxu0 0.0
        %1525 = vmatpush2.xpose.msra.mxu0 0.0
        %1526 = vmatprep.subr.mxu0 0.0
        %1527 = vmatpush2.xpose.msra.mxu0 0.0
        %1528 = vmatprep.subr.mxu0 0.0
        %1529 = vmatpush2.xpose.msra.mxu0 0.0
        %1530 = vmatprep.subr.mxu0 0.0
        %1531 = vmatpush2.xpose.msra.mxu0 0.0
        %1532 = vmatprep.subr.mxu0 0.0
        %1533 = vmatpush2.xpose.msra.mxu0 0.0
        %1534 = vmatprep.subr.mxu0 0.0
        %1535 = vmatpush2.xpose.msra.mxu0 0.0
        %1536 = vmatprep.subr.mxu0 0.0
        %1537 = vmatpush2.xpose.msra.mxu0 0.0
        %1538 = vmatprep.subr.mxu0 0.0
        %1539 = vmatpush2.xpose.msra.mxu0 0.0
        %1540 = vmatprep.subr.mxu0 0.0
        %1541 = vmatpush2.xpose.msra.mxu0 0.0
        %1542 = vmatprep.subr.mxu0 0.0
        %1543 = vmatpush2.xpose.msra.mxu0 0.0
        %1544 = vmatprep.subr.mxu0 0.0
        %1545 = vmatpush2.xpose.msra.mxu0 0.0
        %1546 = vmatprep.subr.mxu0 0.0
        %1547 = vmatpush2.xpose.msra.mxu0 0.0
        %1548 = vmatprep.subr.mxu0 0.0
        %1549 = vmatpush2.xpose.msra.mxu0 0.0
        %1550 = vmatprep.subr.mxu0 0.0
        %1551 = vmatpush2.xpose.msra.mxu0 0.0
        %1552 = vmatprep.subr.mxu0 0.0
        %1553 = vmatpush2.xpose.msra.mxu0 0.0
        %1554 = vmatprep.subr.mxu0 0.0
        %1555 = vmatpush2.xpose.msra.mxu0 0.0
        %1556 = vmatprep.mubr.f32.mxu0 0.0
        %1557 = vmatmul.mubr.f32.gmra.mxu0 %v1481
        %v1558 = vpop.f32.mrf.mxu0
        %v1559 = vadd.f32 0.0, %v1558
        %v1560 = vpop.f32.mrf.mxu0
        %1561 = vmatprep.mubr.f32.mxu0 0.0
        %1562 = vmatmul.mubr.f32.gmra.mxu0 %v1484
        %v1563 = vpop.f32.mrf.mxu0
        %v1564 = vadd.f32 0.0, %v1563
        %v1565 = vpop.f32.mrf.mxu0
        %1566 = vdwg.mxu0
        %v1568 = vsel %vm1479, %v802, 0
        %v1571 = vsel %vm1479, %v870, 0
        %v1574 = vsel %vm1479, %v1112, 0
        %v1577 = vsel %vm1479, %v1180, 0
        %1579 = vmatprep.subr.mxu0 0.0
        %1580 = vmatpush1.xpose.msra.mxu0 0.0
        %1581 = vmatprep.subr.mxu0 0.0
        %1582 = vmatpush1.xpose.msra.mxu0 0.0
        %1583 = vmatprep.subr.mxu0 0.0
        %1584 = vmatpush1.xpose.msra.mxu0 0.0
        %1585 = vmatprep.subr.mxu0 0.0
        %1586 = vmatpush1.xpose.msra.mxu0 0.0
        %1587 = vmatprep.subr.mxu0 0.0
        %1588 = vmatpush1.xpose.msra.mxu0 0.0
        %1589 = vmatprep.subr.mxu0 0.0
        %1590 = vmatpush1.xpose.msra.mxu0 0.0
        %1591 = vmatprep.subr.mxu0 0.0
        %1592 = vmatpush1.xpose.msra.mxu0 0.0
        %1593 = vmatprep.subr.mxu0 0.0
        %1594 = vmatpush1.xpose.msra.mxu0 0.0
        %1595 = vmatprep.subr.mxu0 0.0
        %1596 = vmatpush1.xpose.msra.mxu0 0.0
        %1597 = vmatprep.subr.mxu0 0.0
        %1598 = vmatpush1.xpose.msra.mxu0 0.0
        %1599 = vmatprep.subr.mxu0 0.0
        %1600 = vmatpush1.xpose.msra.mxu0 0.0
        %1601 = vmatprep.subr.mxu0 0.0
        %1602 = vmatpush1.xpose.msra.mxu0 0.0
        %1603 = vmatprep.subr.mxu0 0.0
        %1604 = vmatpush1.xpose.msra.mxu0 0.0
        %1605 = vmatprep.subr.mxu0 0.0
        %1606 = vmatpush1.xpose.msra.mxu0 0.0
        %1607 = vmatprep.subr.mxu0 0.0
        %1608 = vmatpush1.xpose.msra.mxu0 %v1577
        %1609 = vmatprep.subr.mxu0 0.0
        %1610 = vmatpush1.xpose.msra.mxu0 %v1574
        %1611 = vmatprep.subr.mxu0 0.0
        %1612 = vmatpush2.xpose.msra.mxu0 0.0
        %1613 = vmatprep.subr.mxu0 0.0
        %1614 = vmatpush2.xpose.msra.mxu0 0.0
        %1615 = vmatprep.subr.mxu0 0.0
        %1616 = vmatpush2.xpose.msra.mxu0 0.0
        %1617 = vmatprep.subr.mxu0 0.0
        %1618 = vmatpush2.xpose.msra.mxu0 0.0
        %1619 = vmatprep.subr.mxu0 0.0
        %1620 = vmatpush2.xpose.msra.mxu0 0.0
        %1621 = vmatprep.subr.mxu0 0.0
        %1622 = vmatpush2.xpose.msra.mxu0 0.0
        %1623 = vmatprep.subr.mxu0 0.0
        %1624 = vmatpush2.xpose.msra.mxu0 0.0
        %1625 = vmatprep.subr.mxu0 0.0
        %1626 = vmatpush2.xpose.msra.mxu0 0.0
        %1627 = vmatprep.subr.mxu0 0.0
        %1628 = vmatpush2.xpose.msra.mxu0 0.0
        %1629 = vmatprep.subr.mxu0 0.0
        %1630 = vmatpush2.xpose.msra.mxu0 0.0
        %1631 = vmatprep.subr.mxu0 0.0
        %1632 = vmatpush2.xpose.msra.mxu0 0.0
        %1633 = vmatprep.subr.mxu0 0.0
        %1634 = vmatpush2.xpose.msra.mxu0 0.0
        %1635 = vmatprep.subr.mxu0 0.0
        %1636 = vmatpush2.xpose.msra.mxu0 0.0
        %1637 = vmatprep.subr.mxu0 0.0
        %1638 = vmatpush2.xpose.msra.mxu0 0.0
        %1639 = vmatprep.subr.mxu0 0.0
        %1640 = vmatpush2.xpose.msra.mxu0 0.0
        %1641 = vmatprep.subr.mxu0 0.0
        %1642 = vmatpush2.xpose.msra.mxu0 0.0
        %1643 = vmatprep.mubr.f32.mxu0 0.0
        %1644 = vmatmul.mubr.f32.gmra.mxu0 %v1568
        %v1645 = vpop.f32.mrf.mxu0
        %v1646 = vadd.f32 0.0, %v1645
        %v1647 = vpop.f32.mrf.mxu0
        %1648 = vmatprep.mubr.f32.mxu0 0.0
        %1649 = vmatmul.mubr.f32.gmra.mxu0 %v1571
        %v1650 = vpop.f32.mrf.mxu0
        %v1651 = vadd.f32 0.0, %v1650
        %v1652 = vpop.f32.mrf.mxu0
        %1653 = vdwg.mxu0
        %v1655 = vsel %vm1479, %v803, 0
        %v1658 = vsel %vm1479, %v871, 0
        %v1661 = vsel %vm1479, %v1113, 0
        %v1664 = vsel %vm1479, %v1181, 0
        %1666 = vmatprep.subr.mxu0 0.0
        %1667 = vmatpush1.xpose.msra.mxu0 0.0
        %1668 = vmatprep.subr.mxu0 0.0
        %1669 = vmatpush1.xpose.msra.mxu0 0.0
        %1670 = vmatprep.subr.mxu0 0.0
        %1671 = vmatpush1.xpose.msra.mxu0 0.0
        %1672 = vmatprep.subr.mxu0 0.0
        %1673 = vmatpush1.xpose.msra.mxu0 0.0
        %1674 = vmatprep.subr.mxu0 0.0
        %1675 = vmatpush1.xpose.msra.mxu0 0.0
        %1676 = vmatprep.subr.mxu0 0.0
        %1677 = vmatpush1.xpose.msra.mxu0 0.0
        %1678 = vmatprep.subr.mxu0 0.0
        %1679 = vmatpush1.xpose.msra.mxu0 0.0
        %1680 = vmatprep.subr.mxu0 0.0
        %1681 = vmatpush1.xpose.msra.mxu0 0.0
        %1682 = vmatprep.subr.mxu0 0.0
        %1683 = vmatpush1.xpose.msra.mxu0 0.0
        %1684 = vmatprep.subr.mxu0 0.0
        %1685 = vmatpush1.xpose.msra.mxu0 0.0
        %1686 = vmatprep.subr.mxu0 0.0
        %1687 = vmatpush1.xpose.msra.mxu0 0.0
        %1688 = vmatprep.subr.mxu0 0.0
        %1689 = vmatpush1.xpose.msra.mxu0 0.0
        %1690 = vmatprep.subr.mxu0 0.0
        %1691 = vmatpush1.xpose.msra.mxu0 0.0
        %1692 = vmatprep.subr.mxu0 0.0
        %1693 = vmatpush1.xpose.msra.mxu0 0.0
        %1694 = vmatprep.subr.mxu0 0.0
        %1695 = vmatpush1.xpose.msra.mxu0 %v1664
        %1696 = vmatprep.subr.mxu0 0.0
        %1697 = vmatpush1.xpose.msra.mxu0 %v1661
        %1698 = vmatprep.subr.mxu0 0.0
        %1699 = vmatpush2.xpose.msra.mxu0 0.0
        %1700 = vmatprep.subr.mxu0 0.0
        %1701 = vmatpush2.xpose.msra.mxu0 0.0
        %1702 = vmatprep.subr.mxu0 0.0
        %1703 = vmatpush2.xpose.msra.mxu0 0.0
        %1704 = vmatprep.subr.mxu0 0.0
        %1705 = vmatpush2.xpose.msra.mxu0 0.0
        %1706 = vmatprep.subr.mxu0 0.0
        %1707 = vmatpush2.xpose.msra.mxu0 0.0
        %1708 = vmatprep.subr.mxu0 0.0
        %1709 = vmatpush2.xpose.msra.mxu0 0.0
        %1710 = vmatprep.subr.mxu0 0.0
        %1711 = vmatpush2.xpose.msra.mxu0 0.0
        %1712 = vmatprep.subr.mxu0 0.0
        %1713 = vmatpush2.xpose.msra.mxu0 0.0
        %1714 = vmatprep.subr.mxu0 0.0
        %1715 = vmatpush2.xpose.msra.mxu0 0.0
        %1716 = vmatprep.subr.mxu0 0.0
        %1717 = vmatpush2.xpose.msra.mxu0 0.0
        %1718 = vmatprep.subr.mxu0 0.0
        %1719 = vmatpush2.xpose.msra.mxu0 0.0
        %1720 = vmatprep.subr.mxu0 0.0
        %1721 = vmatpush2.xpose.msra.mxu0 0.0
        %1722 = vmatprep.subr.mxu0 0.0
        %1723 = vmatpush2.xpose.msra.mxu0 0.0
        %1724 = vmatprep.subr.mxu0 0.0
        %1725 = vmatpush2.xpose.msra.mxu0 0.0
        %1726 = vmatprep.subr.mxu0 0.0
        %1727 = vmatpush2.xpose.msra.mxu0 0.0
        %1728 = vmatprep.subr.mxu0 0.0
        %1729 = vmatpush2.xpose.msra.mxu0 0.0
        %1730 = vmatprep.mubr.f32.mxu0 0.0
        %1731 = vmatmul.mubr.f32.gmra.mxu0 %v1655
        %v1732 = vpop.f32.mrf.mxu0
        %v1733 = vadd.f32 0.0, %v1732
        %v1734 = vpop.f32.mrf.mxu0
        %1735 = vmatprep.mubr.f32.mxu0 0.0
        %1736 = vmatmul.mubr.f32.gmra.mxu0 %v1658
        %v1737 = vpop.f32.mrf.mxu0
        %v1738 = vadd.f32 0.0, %v1737
        %v1739 = vpop.f32.mrf.mxu0
        %1740 = vdwg.mxu0
        %v1742 = vsel %vm1479, %v804, 0
        %v1745 = vsel %vm1479, %v872, 0
        %v1748 = vsel %vm1479, %v1114, 0
        %v1751 = vsel %vm1479, %v1182, 0
        %1753 = vmatprep.subr.mxu0 0.0
        %1754 = vmatpush1.xpose.msra.mxu0 0.0
        %1755 = vmatprep.subr.mxu0 0.0
        %1756 = vmatpush1.xpose.msra.mxu0 0.0
        %1757 = vmatprep.subr.mxu0 0.0
        %1758 = vmatpush1.xpose.msra.mxu0 0.0
        %1759 = vmatprep.subr.mxu0 0.0
        %1760 = vmatpush1.xpose.msra.mxu0 0.0
        %1761 = vmatprep.subr.mxu0 0.0
        %1762 = vmatpush1.xpose.msra.mxu0 0.0
        %1763 = vmatprep.subr.mxu0 0.0
        %1764 = vmatpush1.xpose.msra.mxu0 0.0
        %1765 = vmatprep.subr.mxu0 0.0
        %1766 = vmatpush1.xpose.msra.mxu0 0.0
        %1767 = vmatprep.subr.mxu0 0.0
        %1768 = vmatpush1.xpose.msra.mxu0 0.0
        %1769 = vmatprep.subr.mxu0 0.0
        %1770 = vmatpush1.xpose.msra.mxu0 0.0
        %1771 = vmatprep.subr.mxu0 0.0
        %1772 = vmatpush1.xpose.msra.mxu0 0.0
        %1773 = vmatprep.subr.mxu0 0.0
        %1774 = vmatpush1.xpose.msra.mxu0 0.0
        %1775 = vmatprep.subr.mxu0 0.0
        %1776 = vmatpush1.xpose.msra.mxu0 0.0
        %1777 = vmatprep.subr.mxu0 0.0
        %1778 = vmatpush1.xpose.msra.mxu0 0.0
        %1779 = vmatprep.subr.mxu0 0.0
        %1780 = vmatpush1.xpose.msra.mxu0 0.0
        %1781 = vmatprep.subr.mxu0 0.0
        %1782 = vmatpush1.xpose.msra.mxu0 %v1751
        %1783 = vmatprep.subr.mxu0 0.0
        %1784 = vmatpush1.xpose.msra.mxu0 %v1748
        %1785 = vmatprep.subr.mxu0 0.0
        %1786 = vmatpush2.xpose.msra.mxu0 0.0
        %1787 = vmatprep.subr.mxu0 0.0
        %1788 = vmatpush2.xpose.msra.mxu0 0.0
        %1789 = vmatprep.subr.mxu0 0.0
        %1790 = vmatpush2.xpose.msra.mxu0 0.0
        %1791 = vmatprep.subr.mxu0 0.0
        %1792 = vmatpush2.xpose.msra.mxu0 0.0
        %1793 = vmatprep.subr.mxu0 0.0
        %1794 = vmatpush2.xpose.msra.mxu0 0.0
        %1795 = vmatprep.subr.mxu0 0.0
        %1796 = vmatpush2.xpose.msra.mxu0 0.0
        %1797 = vmatprep.subr.mxu0 0.0
        %1798 = vmatpush2.xpose.msra.mxu0 0.0
        %1799 = vmatprep.subr.mxu0 0.0
        %1800 = vmatpush2.xpose.msra.mxu0 0.0
        %1801 = vmatprep.subr.mxu0 0.0
        %1802 = vmatpush2.xpose.msra.mxu0 0.0
        %1803 = vmatprep.subr.mxu0 0.0
        %1804 = vmatpush2.xpose.msra.mxu0 0.0
        %1805 = vmatprep.subr.mxu0 0.0
        %1806 = vmatpush2.xpose.msra.mxu0 0.0
        %1807 = vmatprep.subr.mxu0 0.0
        %1808 = vmatpush2.xpose.msra.mxu0 0.0
        %1809 = vmatprep.subr.mxu0 0.0
        %1810 = vmatpush2.xpose.msra.mxu0 0.0
        %1811 = vmatprep.subr.mxu0 0.0
        %1812 = vmatpush2.xpose.msra.mxu0 0.0
        %1813 = vmatprep.subr.mxu0 0.0
        %1814 = vmatpush2.xpose.msra.mxu0 0.0
        %1815 = vmatprep.subr.mxu0 0.0
        %1816 = vmatpush2.xpose.msra.mxu0 0.0
        %1817 = vmatprep.mubr.f32.mxu0 0.0
        %1818 = vmatmul.mubr.f32.gmra.mxu0 %v1742
        %v1819 = vpop.f32.mrf.mxu0
        %v1820 = vadd.f32 0.0, %v1819
        %v1821 = vpop.f32.mrf.mxu0
        %1822 = vmatprep.mubr.f32.mxu0 0.0
        %1823 = vmatmul.mubr.f32.gmra.mxu0 %v1745
        %v1824 = vpop.f32.mrf.mxu0
        %v1825 = vadd.f32 0.0, %v1824
        %v1826 = vpop.f32.mrf.mxu0
        %1827 = vdwg.mxu0
        %v1828 = vlaneseq
        %v1829 = vand.u32 %v1828, 127
        %vm1830 = vcmp.lt.s32.totalorder %v1829, 10
        %v1831 = vsel %vm1830, 1, 0
        %vm1832 = vcmp.eq.s32.totalorder %v1831, 1
        %v1833 = vsel %vm1832, %v1559, -1e+30
        %v1834 = vsel %vm1832, %v1564, -1e+30
        %v1835 = vsel %vm1832, %v1646, -1e+30
        %v1836 = vsel %vm1832, %v1651, -1e+30
        %v1837 = vsel %vm1832, %v1733, -1e+30
        %v1838 = vsel %vm1832, %v1738, -1e+30
        %v1839 = vsel %vm1832, %v1820, -1e+30
        %v1840 = vsel %vm1832, %v1825, -1e+30
        %vm1841 = vcmask 130048
        %v1842 = vsel %vm1841, %v1833, -inf
        %1843 = vmax.xlane.f32.xlu0 %v1842
        %v1844 = vpop.xlane.xlu0 %1843
        %v1845 = vsel %vm1841, %v1834, -inf
        %1846 = vmax.xlane.f32.xlu0 %v1845
        %v1847 = vpop.xlane.xlu0 %1846
        %v1848 = vsel %vm1841, %v1835, -inf
        %1849 = vmax.xlane.f32.xlu0 %v1848
        %v1850 = vpop.xlane.xlu0 %1849
        %v1851 = vsel %vm1841, %v1836, -inf
        %1852 = vmax.xlane.f32.xlu0 %v1851
        %v1853 = vpop.xlane.xlu0 %1852
        %v1854 = vsel %vm1841, %v1837, -inf
        %1855 = vmax.xlane.f32.xlu0 %v1854
        %v1856 = vpop.xlane.xlu0 %1855
        %v1857 = vsel %vm1841, %v1838, -inf
        %1858 = vmax.xlane.f32.xlu0 %v1857
        %v1859 = vpop.xlane.xlu0 %1858
        %v1860 = vsel %vm1841, %v1839, -inf
        %1861 = vmax.xlane.f32.xlu0 %v1860
        %v1862 = vpop.xlane.xlu0 %1861
        %v1863 = vsel %vm1841, %v1840, -inf
        %1864 = vmax.xlane.f32.xlu0 %v1863
        %v1865 = vpop.xlane.xlu0 %1864
        %v1866 = vsub.f32 %v1833, %v1844
        %v1867 = vsub.f32 %v1834, %v1847
        %v1868 = vsub.f32 %v1835, %v1850
        %v1869 = vsub.f32 %v1836, %v1853
        %v1870 = vsub.f32 %v1837, %v1856
        %v1871 = vsub.f32 %v1838, %v1859
        %v1872 = vsub.f32 %v1839, %v1862
        %v1873 = vsub.f32 %v1840, %v1865
        %v1874 = vmul.f32 %v1866, 1.442695
        %v1875 = vpow.pop %v1874
        %v1876 = vmul.f32 %v1867, 1.442695
        %v1877 = vpow.pop %v1876
        %v1878 = vmul.f32 %v1868, 1.442695
        %v1879 = vpow.pop %v1878
        %v1880 = vmul.f32 %v1869, 1.442695
        %v1881 = vpow.pop %v1880
        %v1882 = vmul.f32 %v1870, 1.442695
        %v1883 = vpow.pop %v1882
        %v1884 = vmul.f32 %v1871, 1.442695
        %v1885 = vpow.pop %v1884
        %v1886 = vmul.f32 %v1872, 1.442695
        %v1887 = vpow.pop %v1886
        %v1888 = vmul.f32 %v1873, 1.442695
        %v1889 = vpow.pop %v1888
        %v1890 = vsel %vm1841, %v1875, 0.0
        %1891 = vadd.xlane.f32.xlu0 %v1890
        %v1892 = vpop.xlane.xlu0 %1891
        %v1893 = vsel %vm1841, %v1877, 0.0
        %1894 = vadd.xlane.f32.xlu0 %v1893
        %v1895 = vpop.xlane.xlu0 %1894
        %v1896 = vsel %vm1841, %v1879, 0.0
        %1897 = vadd.xlane.f32.xlu0 %v1896
        %v1898 = vpop.xlane.xlu0 %1897
        %v1899 = vsel %vm1841, %v1881, 0.0
        %1900 = vadd.xlane.f32.xlu0 %v1899
        %v1901 = vpop.xlane.xlu0 %1900
        %v1902 = vsel %vm1841, %v1883, 0.0
        %1903 = vadd.xlane.f32.xlu0 %v1902
        %v1904 = vpop.xlane.xlu0 %1903
        %v1905 = vsel %vm1841, %v1885, 0.0
        %1906 = vadd.xlane.f32.xlu0 %v1905
        %v1907 = vpop.xlane.xlu0 %1906
        %v1908 = vsel %vm1841, %v1887, 0.0
        %1909 = vadd.xlane.f32.xlu0 %v1908
        %v1910 = vpop.xlane.xlu0 %1909
        %v1911 = vsel %vm1841, %v1889, 0.0
        %1912 = vadd.xlane.f32.xlu0 %v1911
        %v1913 = vpop.xlane.xlu0 %1912
        %v1914 = vrcp.pop %v1892
        %v1915 = vmul.f32 %v1875, %v1914
        %v1916 = vrcp.pop %v1895
        %v1917 = vmul.f32 %v1877, %v1916
        %v1918 = vrcp.pop %v1898
        %v1919 = vmul.f32 %v1879, %v1918
        %v1920 = vrcp.pop %v1901
        %v1921 = vmul.f32 %v1881, %v1920
        %v1922 = vrcp.pop %v1904
        %v1923 = vmul.f32 %v1883, %v1922
        %v1924 = vrcp.pop %v1907
        %v1925 = vmul.f32 %v1885, %v1924
        %v1926 = vrcp.pop %v1910
        %v1927 = vmul.f32 %v1887, %v1926
        %v1928 = vrcp.pop %v1913
        %v1929 = vmul.f32 %v1889, %v1928
        %v1931 = vsel %vm1841, %v1915, 0
        %v1934 = vsel %vm1841, %v1917, 0
        %1936 = vmatprep.subr.mxu0 0.0
        %1937 = vmatpush1.msra.mxu0 0.0
        %1938 = vmatprep.subr.mxu0 0.0
        %1939 = vmatpush1.msra.mxu0 0.0
        %1940 = vmatprep.subr.mxu0 0.0
        %1941 = vmatpush1.msra.mxu0 0.0
        %1942 = vmatprep.subr.mxu0 0.0
        %1943 = vmatpush1.msra.mxu0 0.0
        %1944 = vmatprep.subr.mxu0 0.0
        %1945 = vmatpush1.msra.mxu0 0.0
        %1946 = vmatprep.subr.mxu0 0.0
        %1947 = vmatpush1.msra.mxu0 0.0
        %1948 = vmatprep.subr.mxu0 0.0
        %1949 = vmatpush1.msra.mxu0 0.0
        %1950 = vmatprep.subr.mxu0 0.0
        %1951 = vmatpush1.msra.mxu0 0.0
        %1952 = vmatprep.subr.mxu0 0.0
        %1953 = vmatpush1.msra.mxu0 0.0
        %1954 = vmatprep.subr.mxu0 0.0
        %1955 = vmatpush1.msra.mxu0 0.0
        %1956 = vmatprep.subr.mxu0 0.0
        %1957 = vmatpush1.msra.mxu0 0.0
        %1958 = vmatprep.subr.mxu0 0.0
        %1959 = vmatpush1.msra.mxu0 0.0
        %1960 = vmatprep.subr.mxu0 0.0
        %1961 = vmatpush1.msra.mxu0 0.0
        %1962 = vmatprep.subr.mxu0 0.0
        %1963 = vmatpush1.msra.mxu0 0.0
        %1964 = vmatprep.subr.mxu0 0.0
        %1965 = vmatpush1.msra.mxu0 %v1475
        %1966 = vmatprep.subr.mxu0 0.0
        %1967 = vmatpush1.msra.mxu0 %v1407
        %1968 = vmatprep.subr.mxu0 0.0
        %1969 = vmatpush2.msra.mxu0 0.0
        %1970 = vmatprep.subr.mxu0 0.0
        %1971 = vmatpush2.msra.mxu0 0.0
        %1972 = vmatprep.subr.mxu0 0.0
        %1973 = vmatpush2.msra.mxu0 0.0
        %1974 = vmatprep.subr.mxu0 0.0
        %1975 = vmatpush2.msra.mxu0 0.0
        %1976 = vmatprep.subr.mxu0 0.0
        %1977 = vmatpush2.msra.mxu0 0.0
        %1978 = vmatprep.subr.mxu0 0.0
        %1979 = vmatpush2.msra.mxu0 0.0
        %1980 = vmatprep.subr.mxu0 0.0
        %1981 = vmatpush2.msra.mxu0 0.0
        %1982 = vmatprep.subr.mxu0 0.0
        %1983 = vmatpush2.msra.mxu0 0.0
        %1984 = vmatprep.subr.mxu0 0.0
        %1985 = vmatpush2.msra.mxu0 0.0
        %1986 = vmatprep.subr.mxu0 0.0
        %1987 = vmatpush2.msra.mxu0 0.0
        %1988 = vmatprep.subr.mxu0 0.0
        %1989 = vmatpush2.msra.mxu0 0.0
        %1990 = vmatprep.subr.mxu0 0.0
        %1991 = vmatpush2.msra.mxu0 0.0
        %1992 = vmatprep.subr.mxu0 0.0
        %1993 = vmatpush2.msra.mxu0 0.0
        %1994 = vmatprep.subr.mxu0 0.0
        %1995 = vmatpush2.msra.mxu0 0.0
        %1996 = vmatprep.subr.mxu0 0.0
        %1997 = vmatpush2.msra.mxu0 0.0
        %1998 = vmatprep.subr.mxu0 0.0
        %1999 = vmatpush2.msra.mxu0 0.0
        %2000 = vmatprep.mubr.f32.mxu0 0.0
        %2001 = vmatmul.mubr.f32.gmra.mxu0 %v1931
        %v2002 = vpop.f32.mrf.mxu0
        %v2003 = vadd.f32 0.0, %v2002
        %v2004 = vpop.f32.mrf.mxu0
        %2005 = vmatprep.mubr.f32.mxu0 0.0
        %2006 = vmatmul.mubr.f32.gmra.mxu0 %v1934
        %v2007 = vpop.f32.mrf.mxu0
        %v2008 = vadd.f32 0.0, %v2007
        %v2009 = vpop.f32.mrf.mxu0
        %2010 = vdwg.mxu0
        %v2012 = vsel %vm1841, %v1919, 0
        %v2015 = vsel %vm1841, %v1921, 0
        %2017 = vmatprep.subr.mxu0 0.0
        %2018 = vmatpush1.msra.mxu0 0.0
        %2019 = vmatprep.subr.mxu0 0.0
        %2020 = vmatpush1.msra.mxu0 0.0
        %2021 = vmatprep.subr.mxu0 0.0
        %2022 = vmatpush1.msra.mxu0 0.0
        %2023 = vmatprep.subr.mxu0 0.0
        %2024 = vmatpush1.msra.mxu0 0.0
        %2025 = vmatprep.subr.mxu0 0.0
        %2026 = vmatpush1.msra.mxu0 0.0
        %2027 = vmatprep.subr.mxu0 0.0
        %2028 = vmatpush1.msra.mxu0 0.0
        %2029 = vmatprep.subr.mxu0 0.0
        %2030 = vmatpush1.msra.mxu0 0.0
        %2031 = vmatprep.subr.mxu0 0.0
        %2032 = vmatpush1.msra.mxu0 0.0
        %2033 = vmatprep.subr.mxu0 0.0
        %2034 = vmatpush1.msra.mxu0 0.0
        %2035 = vmatprep.subr.mxu0 0.0
        %2036 = vmatpush1.msra.mxu0 0.0
        %2037 = vmatprep.subr.mxu0 0.0
        %2038 = vmatpush1.msra.mxu0 0.0
        %2039 = vmatprep.subr.mxu0 0.0
        %2040 = vmatpush1.msra.mxu0 0.0
        %2041 = vmatprep.subr.mxu0 0.0
        %2042 = vmatpush1.msra.mxu0 0.0
        %2043 = vmatprep.subr.mxu0 0.0
        %2044 = vmatpush1.msra.mxu0 0.0
        %2045 = vmatprep.subr.mxu0 0.0
        %2046 = vmatpush1.msra.mxu0 %v1476
        %2047 = vmatprep.subr.mxu0 0.0
        %2048 = vmatpush1.msra.mxu0 %v1408
        %2049 = vmatprep.subr.mxu0 0.0
        %2050 = vmatpush2.msra.mxu0 0.0
        %2051 = vmatprep.subr.mxu0 0.0
        %2052 = vmatpush2.msra.mxu0 0.0
        %2053 = vmatprep.subr.mxu0 0.0
        %2054 = vmatpush2.msra.mxu0 0.0
        %2055 = vmatprep.subr.mxu0 0.0
        %2056 = vmatpush2.msra.mxu0 0.0
        %2057 = vmatprep.subr.mxu0 0.0
        %2058 = vmatpush2.msra.mxu0 0.0
        %2059 = vmatprep.subr.mxu0 0.0
        %2060 = vmatpush2.msra.mxu0 0.0
        %2061 = vmatprep.subr.mxu0 0.0
        %2062 = vmatpush2.msra.mxu0 0.0
        %2063 = vmatprep.subr.mxu0 0.0
        %2064 = vmatpush2.msra.mxu0 0.0
        %2065 = vmatprep.subr.mxu0 0.0
        %2066 = vmatpush2.msra.mxu0 0.0
        %2067 = vmatprep.subr.mxu0 0.0
        %2068 = vmatpush2.msra.mxu0 0.0
        %2069 = vmatprep.subr.mxu0 0.0
        %2070 = vmatpush2.msra.mxu0 0.0
        %2071 = vmatprep.subr.mxu0 0.0
        %2072 = vmatpush2.msra.mxu0 0.0
        %2073 = vmatprep.subr.mxu0 0.0
        %2074 = vmatpush2.msra.mxu0 0.0
        %2075 = vmatprep.subr.mxu0 0.0
        %2076 = vmatpush2.msra.mxu0 0.0
        %2077 = vmatprep.subr.mxu0 0.0
        %2078 = vmatpush2.msra.mxu0 0.0
        %2079 = vmatprep.subr.mxu0 0.0
        %2080 = vmatpush2.msra.mxu0 0.0
        %2081 = vmatprep.mubr.f32.mxu0 0.0
        %2082 = vmatmul.mubr.f32.gmra.mxu0 %v2012
        %v2083 = vpop.f32.mrf.mxu0
        %v2084 = vadd.f32 0.0, %v2083
        %v2085 = vpop.f32.mrf.mxu0
        %2086 = vmatprep.mubr.f32.mxu0 0.0
        %2087 = vmatmul.mubr.f32.gmra.mxu0 %v2015
        %v2088 = vpop.f32.mrf.mxu0
        %v2089 = vadd.f32 0.0, %v2088
        %v2090 = vpop.f32.mrf.mxu0
        %2091 = vdwg.mxu0
        %v2093 = vsel %vm1841, %v1923, 0
        %v2096 = vsel %vm1841, %v1925, 0
        %2098 = vmatprep.subr.mxu0 0.0
        %2099 = vmatpush1.msra.mxu0 0.0
        %2100 = vmatprep.subr.mxu0 0.0
        %2101 = vmatpush1.msra.mxu0 0.0
        %2102 = vmatprep.subr.mxu0 0.0
        %2103 = vmatpush1.msra.mxu0 0.0
        %2104 = vmatprep.subr.mxu0 0.0
        %2105 = vmatpush1.msra.mxu0 0.0
        %2106 = vmatprep.subr.mxu0 0.0
        %2107 = vmatpush1.msra.mxu0 0.0
        %2108 = vmatprep.subr.mxu0 0.0
        %2109 = vmatpush1.msra.mxu0 0.0
        %2110 = vmatprep.subr.mxu0 0.0
        %2111 = vmatpush1.msra.mxu0 0.0
        %2112 = vmatprep.subr.mxu0 0.0
        %2113 = vmatpush1.msra.mxu0 0.0
        %2114 = vmatprep.subr.mxu0 0.0
        %2115 = vmatpush1.msra.mxu0 0.0
        %2116 = vmatprep.subr.mxu0 0.0
        %2117 = vmatpush1.msra.mxu0 0.0
        %2118 = vmatprep.subr.mxu0 0.0
        %2119 = vmatpush1.msra.mxu0 0.0
        %2120 = vmatprep.subr.mxu0 0.0
        %2121 = vmatpush1.msra.mxu0 0.0
        %2122 = vmatprep.subr.mxu0 0.0
        %2123 = vmatpush1.msra.mxu0 0.0
        %2124 = vmatprep.subr.mxu0 0.0
        %2125 = vmatpush1.msra.mxu0 0.0
        %2126 = vmatprep.subr.mxu0 0.0
        %2127 = vmatpush1.msra.mxu0 %v1477
        %2128 = vmatprep.subr.mxu0 0.0
        %2129 = vmatpush1.msra.mxu0 %v1409
        %2130 = vmatprep.subr.mxu0 0.0
        %2131 = vmatpush2.msra.mxu0 0.0
        %2132 = vmatprep.subr.mxu0 0.0
        %2133 = vmatpush2.msra.mxu0 0.0
        %2134 = vmatprep.subr.mxu0 0.0
        %2135 = vmatpush2.msra.mxu0 0.0
        %2136 = vmatprep.subr.mxu0 0.0
        %2137 = vmatpush2.msra.mxu0 0.0
        %2138 = vmatprep.subr.mxu0 0.0
        %2139 = vmatpush2.msra.mxu0 0.0
        %2140 = vmatprep.subr.mxu0 0.0
        %2141 = vmatpush2.msra.mxu0 0.0
        %2142 = vmatprep.subr.mxu0 0.0
        %2143 = vmatpush2.msra.mxu0 0.0
        %2144 = vmatprep.subr.mxu0 0.0
        %2145 = vmatpush2.msra.mxu0 0.0
        %2146 = vmatprep.subr.mxu0 0.0
        %2147 = vmatpush2.msra.mxu0 0.0
        %2148 = vmatprep.subr.mxu0 0.0
        %2149 = vmatpush2.msra.mxu0 0.0
        %2150 = vmatprep.subr.mxu0 0.0
        %2151 = vmatpush2.msra.mxu0 0.0
        %2152 = vmatprep.subr.mxu0 0.0
        %2153 = vmatpush2.msra.mxu0 0.0
        %2154 = vmatprep.subr.mxu0 0.0
        %2155 = vmatpush2.msra.mxu0 0.0
        %2156 = vmatprep.subr.mxu0 0.0
        %2157 = vmatpush2.msra.mxu0 0.0
        %2158 = vmatprep.subr.mxu0 0.0
        %2159 = vmatpush2.msra.mxu0 0.0
        %2160 = vmatprep.subr.mxu0 0.0
        %2161 = vmatpush2.msra.mxu0 0.0
        %2162 = vmatprep.mubr.f32.mxu0 0.0
        %2163 = vmatmul.mubr.f32.gmra.mxu0 %v2093
        %v2164 = vpop.f32.mrf.mxu0
        %v2165 = vadd.f32 0.0, %v2164
        %v2166 = vpop.f32.mrf.mxu0
        %2167 = vmatprep.mubr.f32.mxu0 0.0
        %2168 = vmatmul.mubr.f32.gmra.mxu0 %v2096
        %v2169 = vpop.f32.mrf.mxu0
        %v2170 = vadd.f32 0.0, %v2169
        %v2171 = vpop.f32.mrf.mxu0
        %2172 = vdwg.mxu0
        %v2174 = vsel %vm1841, %v1927, 0
        %v2177 = vsel %vm1841, %v1929, 0
        %2179 = vmatprep.subr.mxu0 0.0
        %2180 = vmatpush1.msra.mxu0 0.0
        %2181 = vmatprep.subr.mxu0 0.0
        %2182 = vmatpush1.msra.mxu0 0.0
        %2183 = vmatprep.subr.mxu0 0.0
        %2184 = vmatpush1.msra.mxu0 0.0
        %2185 = vmatprep.subr.mxu0 0.0
        %2186 = vmatpush1.msra.mxu0 0.0
        %2187 = vmatprep.subr.mxu0 0.0
        %2188 = vmatpush1.msra.mxu0 0.0
        %2189 = vmatprep.subr.mxu0 0.0
        %2190 = vmatpush1.msra.mxu0 0.0
        %2191 = vmatprep.subr.mxu0 0.0
        %2192 = vmatpush1.msra.mxu0 0.0
        %2193 = vmatprep.subr.mxu0 0.0
        %2194 = vmatpush1.msra.mxu0 0.0
        %2195 = vmatprep.subr.mxu0 0.0
        %2196 = vmatpush1.msra.mxu0 0.0
        %2197 = vmatprep.subr.mxu0 0.0
        %2198 = vmatpush1.msra.mxu0 0.0
        %2199 = vmatprep.subr.mxu0 0.0
        %2200 = vmatpush1.msra.mxu0 0.0
        %2201 = vmatprep.subr.mxu0 0.0
        %2202 = vmatpush1.msra.mxu0 0.0
        %2203 = vmatprep.subr.mxu0 0.0
        %2204 = vmatpush1.msra.mxu0 0.0
        %2205 = vmatprep.subr.mxu0 0.0
        %2206 = vmatpush1.msra.mxu0 0.0
        %2207 = vmatprep.subr.mxu0 0.0
        %2208 = vmatpush1.msra.mxu0 %v1478
        %2209 = vmatprep.subr.mxu0 0.0
        %2210 = vmatpush1.msra.mxu0 %v1410
        %2211 = vmatprep.subr.mxu0 0.0
        %2212 = vmatpush2.msra.mxu0 0.0
        %2213 = vmatprep.subr.mxu0 0.0
        %2214 = vmatpush2.msra.mxu0 0.0
        %2215 = vmatprep.subr.mxu0 0.0
        %2216 = vmatpush2.msra.mxu0 0.0
        %2217 = vmatprep.subr.mxu0 0.0
        %2218 = vmatpush2.msra.mxu0 0.0
        %2219 = vmatprep.subr.mxu0 0.0
        %2220 = vmatpush2.msra.mxu0 0.0
        %2221 = vmatprep.subr.mxu0 0.0
        %2222 = vmatpush2.msra.mxu0 0.0
        %2223 = vmatprep.subr.mxu0 0.0
        %2224 = vmatpush2.msra.mxu0 0.0
        %2225 = vmatprep.subr.mxu0 0.0
        %2226 = vmatpush2.msra.mxu0 0.0
        %2227 = vmatprep.subr.mxu0 0.0
        %2228 = vmatpush2.msra.mxu0 0.0
        %2229 = vmatprep.subr.mxu0 0.0
        %2230 = vmatpush2.msra.mxu0 0.0
        %2231 = vmatprep.subr.mxu0 0.0
        %2232 = vmatpush2.msra.mxu0 0.0
        %2233 = vmatprep.subr.mxu0 0.0
        %2234 = vmatpush2.msra.mxu0 0.0
        %2235 = vmatprep.subr.mxu0 0.0
        %2236 = vmatpush2.msra.mxu0 0.0
        %2237 = vmatprep.subr.mxu0 0.0
        %2238 = vmatpush2.msra.mxu0 0.0
        %2239 = vmatprep.subr.mxu0 0.0
        %2240 = vmatpush2.msra.mxu0 0.0
        %2241 = vmatprep.subr.mxu0 0.0
        %2242 = vmatpush2.msra.mxu0 0.0
        %2243 = vmatprep.mubr.f32.mxu0 0.0
        %2244 = vmatmul.mubr.f32.gmra.mxu0 %v2174
        %v2245 = vpop.f32.mrf.mxu0
        %v2246 = vadd.f32 0.0, %v2245
        %v2247 = vpop.f32.mrf.mxu0
        %2248 = vmatprep.mubr.f32.mxu0 0.0
        %2249 = vmatmul.mubr.f32.gmra.mxu0 %v2177
        %v2250 = vpop.f32.mrf.mxu0
        %v2251 = vadd.f32 0.0, %v2250
        %v2252 = vpop.f32.mrf.mxu0
        %2253 = vdwg.mxu0
        %v2254 = vcombine.low %v2003, %v2165
        %v2255 = vcombine.high %v2003, %v2165
        %v2257 = vunpack.c.l.s4 1983009808
        %v2258 = vunpack.c.0.s8 %v2257
        %v2259 = vlaneseq
        %v2260 = vshrl.u32 %v2259, 7
        %v2261 = vsub.s32 %v2258, %v2260
        %v2262 = vrot.slane %v2254, %v2261
        %v2264 = vunpack.c.l.s4 1983009808
        %v2265 = vunpack.c.0.s8 %v2264
        %v2266 = vlaneseq
        %v2267 = vshrl.u32 %v2266, 7
        %v2268 = vsub.s32 %v2265, %v2267
        %v2269 = vrot.slane %v2255, %v2268
        %v2270 = vcombine.low %v2084, %v2246
        %v2271 = vcombine.high %v2084, %v2246
        %v2273 = vunpack.c.l.s4 1983009808
        %v2274 = vunpack.c.0.s8 %v2273
        %v2275 = vlaneseq
        %v2276 = vshrl.u32 %v2275, 7
        %v2277 = vsub.s32 %v2274, %v2276
        %v2278 = vrot.slane %v2270, %v2277
        %v2280 = vunpack.c.l.s4 1983009808
        %v2281 = vunpack.c.0.s8 %v2280
        %v2282 = vlaneseq
        %v2283 = vshrl.u32 %v2282, 7
        %v2284 = vsub.s32 %v2281, %v2283
        %v2285 = vrot.slane %v2271, %v2284
        %v2286 = vcombine.low %v2262, %v2278
        %v2287 = vcombine.high %v2262, %v2278
        %v2289 = vunpack.c.l.s4 1934713408
        %v2290 = vunpack.c.0.s8 %v2289
        %v2291 = vlaneseq
        %v2292 = vshrl.u32 %v2291, 7
        %v2293 = vsub.s32 %v2290, %v2292
        %v2294 = vrot.slane %v2286, %v2293
        %v2296 = vunpack.c.l.s4 1934713408
        %v2297 = vunpack.c.0.s8 %v2296
        %v2298 = vlaneseq
        %v2299 = vshrl.u32 %v2298, 7
        %v2300 = vsub.s32 %v2297, %v2299
        %v2301 = vrot.slane %v2287, %v2300
        %v2302 = vcombine.low %v2269, %v2285
        %v2303 = vcombine.high %v2269, %v2285
        %v2305 = vunpack.c.l.s4 1934713408
        %v2306 = vunpack.c.0.s8 %v2305
        %v2307 = vlaneseq
        %v2308 = vshrl.u32 %v2307, 7
        %v2309 = vsub.s32 %v2306, %v2308
        %v2310 = vrot.slane %v2302, %v2309
        %v2312 = vunpack.c.l.s4 1934713408
        %v2313 = vunpack.c.0.s8 %v2312
        %v2314 = vlaneseq
        %v2315 = vshrl.u32 %v2314, 7
        %v2316 = vsub.s32 %v2313, %v2315
        %v2317 = vrot.slane %v2303, %v2316
        %v2318 = vcombine.high %v2294, 0.0
        %v2319 = vcombine.high %v2301, 0.0
        %v2320 = vcombine.high %v2310, 0.0
        %v2321 = vcombine.high %v2317, 0.0
        %v2322 = vcombine.low %v2008, %v2170
        %v2323 = vcombine.high %v2008, %v2170
        %v2325 = vunpack.c.l.s4 1983009808
        %v2326 = vunpack.c.0.s8 %v2325
        %v2327 = vlaneseq
        %v2328 = vshrl.u32 %v2327, 7
        %v2329 = vsub.s32 %v2326, %v2328
        %v2330 = vrot.slane %v2322, %v2329
        %v2332 = vunpack.c.l.s4 1983009808
        %v2333 = vunpack.c.0.s8 %v2332
        %v2334 = vlaneseq
        %v2335 = vshrl.u32 %v2334, 7
        %v2336 = vsub.s32 %v2333, %v2335
        %v2337 = vrot.slane %v2323, %v2336
        %v2338 = vcombine.low %v2089, %v2251
        %v2339 = vcombine.high %v2089, %v2251
        %v2341 = vunpack.c.l.s4 1983009808
        %v2342 = vunpack.c.0.s8 %v2341
        %v2343 = vlaneseq
        %v2344 = vshrl.u32 %v2343, 7
        %v2345 = vsub.s32 %v2342, %v2344
        %v2346 = vrot.slane %v2338, %v2345
        %v2348 = vunpack.c.l.s4 1983009808
        %v2349 = vunpack.c.0.s8 %v2348
        %v2350 = vlaneseq
        %v2351 = vshrl.u32 %v2350, 7
        %v2352 = vsub.s32 %v2349, %v2351
        %v2353 = vrot.slane %v2339, %v2352
        %v2354 = vcombine.low %v2330, %v2346
        %v2355 = vcombine.high %v2330, %v2346
        %v2357 = vunpack.c.l.s4 1934713408
        %v2358 = vunpack.c.0.s8 %v2357
        %v2359 = vlaneseq
        %v2360 = vshrl.u32 %v2359, 7
        %v2361 = vsub.s32 %v2358, %v2360
        %v2362 = vrot.slane %v2354, %v2361
        %v2364 = vunpack.c.l.s4 1934713408
        %v2365 = vunpack.c.0.s8 %v2364
        %v2366 = vlaneseq
        %v2367 = vshrl.u32 %v2366, 7
        %v2368 = vsub.s32 %v2365, %v2367
        %v2369 = vrot.slane %v2355, %v2368
        %v2370 = vcombine.low %v2337, %v2353
        %v2371 = vcombine.high %v2337, %v2353
        %v2373 = vunpack.c.l.s4 1934713408
        %v2374 = vunpack.c.0.s8 %v2373
        %v2375 = vlaneseq
        %v2376 = vshrl.u32 %v2375, 7
        %v2377 = vsub.s32 %v2374, %v2376
        %v2378 = vrot.slane %v2370, %v2377
        %v2380 = vunpack.c.l.s4 1934713408
        %v2381 = vunpack.c.0.s8 %v2380
        %v2382 = vlaneseq
        %v2383 = vshrl.u32 %v2382, 7
        %v2384 = vsub.s32 %v2381, %v2383
        %v2385 = vrot.slane %v2371, %v2384
        %v2386 = vcombine.high %v2362, 0.0
        %v2387 = vcombine.high %v2369, 0.0
        %v2388 = vcombine.high %v2378, 0.0
        %v2389 = vcombine.high %v2385, 0.0
        %v2390 = vcombine.low %v2294, %v2301
        %v2392 = vunpack.c.l.s4 1983009808
        %v2393 = vunpack.c.0.s8 %v2392
        %v2394 = vlaneseq
        %v2395 = vshrl.u32 %v2394, 7
        %v2396 = vsub.s32 %v2393, %v2395
        %v2397 = vrot.slane %v2390, %v2396
        %v2398 = vcombine.low %v2318, %v2319
        %v2400 = vunpack.c.l.s4 1983009808
        %v2401 = vunpack.c.0.s8 %v2400
        %v2402 = vlaneseq
        %v2403 = vshrl.u32 %v2402, 7
        %v2404 = vsub.s32 %v2401, %v2403
        %v2405 = vrot.slane %v2398, %v2404
        %v2406 = vcombine.low %v2310, %v2317
        %v2408 = vunpack.c.l.s4 1983009808
        %v2409 = vunpack.c.0.s8 %v2408
        %v2410 = vlaneseq
        %v2411 = vshrl.u32 %v2410, 7
        %v2412 = vsub.s32 %v2409, %v2411
        %v2413 = vrot.slane %v2406, %v2412
        %v2414 = vcombine.low %v2320, %v2321
        %v2416 = vunpack.c.l.s4 1983009808
        %v2417 = vunpack.c.0.s8 %v2416
        %v2418 = vlaneseq
        %v2419 = vshrl.u32 %v2418, 7
        %v2420 = vsub.s32 %v2417, %v2419
        %v2421 = vrot.slane %v2414, %v2420
        %v2422 = vcombine.low %v2397, %v2405
        %v2423 = vcombine.high %v2397, %v2405
        %v2425 = vunpack.c.l.s4 1934713408
        %v2426 = vunpack.c.0.s8 %v2425
        %v2427 = vlaneseq
        %v2428 = vshrl.u32 %v2427, 7
        %v2429 = vsub.s32 %v2426, %v2428
        %v2430 = vrot.slane %v2422, %v2429
        %v2432 = vunpack.c.l.s4 1934713408
        %v2433 = vunpack.c.0.s8 %v2432
        %v2434 = vlaneseq
        %v2435 = vshrl.u32 %v2434, 7
        %v2436 = vsub.s32 %v2433, %v2435
        %v2437 = vrot.slane %v2423, %v2436
        %v2438 = vcombine.low %v2413, %v2421
        %v2439 = vcombine.high %v2413, %v2421
        %v2441 = vunpack.c.l.s4 1934713408
        %v2442 = vunpack.c.0.s8 %v2441
        %v2443 = vlaneseq
        %v2444 = vshrl.u32 %v2443, 7
        %v2445 = vsub.s32 %v2442, %v2444
        %v2446 = vrot.slane %v2438, %v2445
        %v2448 = vunpack.c.l.s4 1934713408
        %v2449 = vunpack.c.0.s8 %v2448
        %v2450 = vlaneseq
        %v2451 = vshrl.u32 %v2450, 7
        %v2452 = vsub.s32 %v2449, %v2451
        %v2453 = vrot.slane %v2439, %v2452
        %v2454 = vcombine.low %v2430, %v2446
        %v2455 = vcombine.high %v2430, %v2446
        %v2456 = vcombine.low %v2437, %v2453
        %v2457 = vcombine.high %v2437, %v2453
        %v2458 = vcombine.low %v2362, %v2369
        %v2460 = vunpack.c.l.s4 1983009808
        %v2461 = vunpack.c.0.s8 %v2460
        %v2462 = vlaneseq
        %v2463 = vshrl.u32 %v2462, 7
        %v2464 = vsub.s32 %v2461, %v2463
        %v2465 = vrot.slane %v2458, %v2464
        %v2466 = vcombine.low %v2386, %v2387
        %v2468 = vunpack.c.l.s4 1983009808
        %v2469 = vunpack.c.0.s8 %v2468
        %v2470 = vlaneseq
        %v2471 = vshrl.u32 %v2470, 7
        %v2472 = vsub.s32 %v2469, %v2471
        %v2473 = vrot.slane %v2466, %v2472
        %v2474 = vcombine.low %v2378, %v2385
        %v2476 = vunpack.c.l.s4 1983009808
        %v2477 = vunpack.c.0.s8 %v2476
        %v2478 = vlaneseq
        %v2479 = vshrl.u32 %v2478, 7
        %v2480 = vsub.s32 %v2477, %v2479
        %v2481 = vrot.slane %v2474, %v2480
        %v2482 = vcombine.low %v2388, %v2389
        %v2484 = vunpack.c.l.s4 1983009808
        %v2485 = vunpack.c.0.s8 %v2484
        %v2486 = vlaneseq
        %v2487 = vshrl.u32 %v2486, 7
        %v2488 = vsub.s32 %v2485, %v2487
        %v2489 = vrot.slane %v2482, %v2488
        %v2490 = vcombine.low %v2465, %v2473
        %v2491 = vcombine.high %v2465, %v2473
        %v2493 = vunpack.c.l.s4 1934713408
        %v2494 = vunpack.c.0.s8 %v2493
        %v2495 = vlaneseq
        %v2496 = vshrl.u32 %v2495, 7
        %v2497 = vsub.s32 %v2494, %v2496
        %v2498 = vrot.slane %v2490, %v2497
        %v2500 = vunpack.c.l.s4 1934713408
        %v2501 = vunpack.c.0.s8 %v2500
        %v2502 = vlaneseq
        %v2503 = vshrl.u32 %v2502, 7
        %v2504 = vsub.s32 %v2501, %v2503
        %v2505 = vrot.slane %v2491, %v2504
        %v2506 = vcombine.low %v2481, %v2489
        %v2507 = vcombine.high %v2481, %v2489
        %v2509 = vunpack.c.l.s4 1934713408
        %v2510 = vunpack.c.0.s8 %v2509
        %v2511 = vlaneseq
        %v2512 = vshrl.u32 %v2511, 7
        %v2513 = vsub.s32 %v2510, %v2512
        %v2514 = vrot.slane %v2506, %v2513
        %v2516 = vunpack.c.l.s4 1934713408
        %v2517 = vunpack.c.0.s8 %v2516
        %v2518 = vlaneseq
        %v2519 = vshrl.u32 %v2518, 7
        %v2520 = vsub.s32 %v2517, %v2519
        %v2521 = vrot.slane %v2507, %v2520
        %v2522 = vcombine.low %v2498, %v2514
        %v2523 = vcombine.high %v2498, %v2514
        %v2524 = vcombine.low %v2505, %v2521
        %v2525 = vcombine.high %v2505, %v2521
        %2528 = vrot.lane.b32.xlu0 %v2455, 8
        %v2529 = vpop.permute.xlu0 %2528
        %2530 = vrot.lane.b32.xlu0 %v2523, 8
        %v2531 = vpop.permute.xlu0 %2530
        %2536 = vrot.lane.b32.xlu0 %v2456, 16
        %v2537 = vpop.permute.xlu0 %2536
        %2538 = vrot.lane.b32.xlu0 %v2524, 16
        %v2539 = vpop.permute.xlu0 %2538
        %2544 = vrot.lane.b32.xlu0 %v2457, 24
        %v2545 = vpop.permute.xlu0 %2544
        %2546 = vrot.lane.b32.xlu0 %v2525, 24
        %v2547 = vpop.permute.xlu0 %2546
        %v2550 = vsel %vm1479, %v2454, %v2529
        %v2551 = vsel %vm1479, %v2522, %v2531
        %v2552 = vsel %vm1841, %v2550, %v2537
        %v2553 = vsel %vm1841, %v2551, %v2539
        %vm2554 = vcmask 195584
        %v2555 = vsel %vm2554, %v2552, %v2545
        %v2556 = vsel %vm2554, %v2553, %v2547
        %v2557 = vld [vmem:[%s3] sm:$0xff]
        %v2558 = vld [vmem:[%s3 + $0x8] sm:$0xff]
        %v2559 = vld [vmem:[%s3 + $0x10] sm:$0xff]
        %v2560 = vld [vmem:[%s3 + $0x18] sm:$0xff]
        %v2561 = vld [vmem:[%s4] sm:$0x1]
        %v2563 = vlaneseq
        %v2564 = vshrl.u32 %v2563, 7
        %v2565 = vsub.s32 0, %v2564
        %v2566 = vrot.slane %v2561, %v2565
        %v2569 = vsel %vm443, %v2555, 0
        %v2572 = vsel %vm443, %v2556, 0
        %2574 = vmatprep.subr.mxu0 0.0
        %2575 = vmatpush1.msra.mxu0 0.0
        %2576 = vmatprep.subr.mxu0 0.0
        %2577 = vmatpush1.msra.mxu0 0.0
        %2578 = vmatprep.subr.mxu0 0.0
        %2579 = vmatpush1.msra.mxu0 0.0
        %2580 = vmatprep.subr.mxu0 0.0
        %2581 = vmatpush1.msra.mxu0 0.0
        %2582 = vmatprep.subr.mxu0 0.0
        %2583 = vmatpush1.msra.mxu0 0.0
        %2584 = vmatprep.subr.mxu0 0.0
        %2585 = vmatpush1.msra.mxu0 0.0
        %2586 = vmatprep.subr.mxu0 0.0
        %2587 = vmatpush1.msra.mxu0 0.0
        %2588 = vmatprep.subr.mxu0 0.0
        %2589 = vmatpush1.msra.mxu0 0.0
        %2590 = vmatprep.subr.mxu0 0.0
        %2591 = vmatpush1.msra.mxu0 0.0
        %2592 = vmatprep.subr.mxu0 0.0
        %2593 = vmatpush1.msra.mxu0 0.0
        %2594 = vmatprep.subr.mxu0 0.0
        %2595 = vmatpush1.msra.mxu0 0.0
        %2596 = vmatprep.subr.mxu0 0.0
        %2597 = vmatpush1.msra.mxu0 0.0
        %2598 = vmatprep.subr.mxu0 0.0
        %2599 = vmatpush1.msra.mxu0 %v2560
        %2600 = vmatprep.subr.mxu0 0.0
        %2601 = vmatpush1.msra.mxu0 %v2559
        %2602 = vmatprep.subr.mxu0 0.0
        %2603 = vmatpush1.msra.mxu0 %v2558
        %2604 = vmatprep.subr.mxu0 0.0
        %2605 = vmatpush1.msra.mxu0 %v2557
        %2606 = vmatprep.subr.mxu0 0.0
        %2607 = vmatpush2.msra.mxu0 0.0
        %2608 = vmatprep.subr.mxu0 0.0
        %2609 = vmatpush2.msra.mxu0 0.0
        %2610 = vmatprep.subr.mxu0 0.0
        %2611 = vmatpush2.msra.mxu0 0.0
        %2612 = vmatprep.subr.mxu0 0.0
        %2613 = vmatpush2.msra.mxu0 0.0
        %2614 = vmatprep.subr.mxu0 0.0
        %2615 = vmatpush2.msra.mxu0 0.0
        %2616 = vmatprep.subr.mxu0 0.0
        %2617 = vmatpush2.msra.mxu0 0.0
        %2618 = vmatprep.subr.mxu0 0.0
        %2619 = vmatpush2.msra.mxu0 0.0
        %2620 = vmatprep.subr.mxu0 0.0
        %2621 = vmatpush2.msra.mxu0 0.0
        %2622 = vmatprep.subr.mxu0 0.0
        %2623 = vmatpush2.msra.mxu0 0.0
        %2624 = vmatprep.subr.mxu0 0.0
        %2625 = vmatpush2.msra.mxu0 0.0
        %2626 = vmatprep.subr.mxu0 0.0
        %2627 = vmatpush2.msra.mxu0 0.0
        %2628 = vmatprep.subr.mxu0 0.0
        %2629 = vmatpush2.msra.mxu0 0.0
        %2630 = vmatprep.subr.mxu0 0.0
        %2631 = vmatpush2.msra.mxu0 0.0
        %2632 = vmatprep.subr.mxu0 0.0
        %2633 = vmatpush2.msra.mxu0 0.0
        %2634 = vmatprep.subr.mxu0 0.0
        %2635 = vmatpush2.msra.mxu0 0.0
        %2636 = vmatprep.subr.mxu0 0.0
        %2637 = vmatpush2.msra.mxu0 0.0
        %2638 = vmatprep.mubr.f32.mxu0 0.0
        %2639 = vmatmul.mubr.f32.gmra.mxu0 %v2569
        %v2640 = vpop.f32.mrf.mxu0
        %v2641 = vadd.f32 %v2566, %v2640
        %v2642 = vpop.f32.mrf.mxu0
        %2643 = vmatprep.mubr.f32.mxu0 0.0
        %2644 = vmatmul.mubr.f32.gmra.mxu0 %v2572
        %v2645 = vpop.f32.mrf.mxu0
        %v2646 = vadd.f32 %v2566, %v2645
        %v2647 = vpop.f32.mrf.mxu0
        %2648 = vdwg.mxu0
        %v2649 = vadd.f32 %v439, %v2641
        %v2650 = vadd.f32 %v440, %v2646
        %v2651 = vld [vmem:[%s7] sm:$0x1]
        %v2652 = vld [vmem:[%s8] sm:$0x1]
        %v2653 = vsel %vm443, %v2649, 0.0
        %2654 = vadd.xlane.f32.xlu0 %v2653
        %v2655 = vpop.xlane.xlu0 %2654
        %v2656 = vsel %vm443, %v2650, 0.0
        %2657 = vadd.xlane.f32.xlu0 %v2656
        %v2658 = vpop.xlane.xlu0 %2657
        %v2659 = vmul.f32 %v2655, %v450
        %v2660 = vmul.f32 %v2658, %v450
        %v2661 = vsub.f32 %v2649, %v2659
        %v2662 = vsub.f32 %v2650, %v2660
        %v2663 = vmul.f32 %v2661, %v2661
        %v2664 = vmul.f32 %v2662, %v2662
        %v2665 = vsel %vm443, %v2663, 0.0
        %2666 = vadd.xlane.f32.xlu0 %v2665
        %v2667 = vpop.xlane.xlu0 %2666
        %v2668 = vsel %vm443, %v2664, 0.0
        %2669 = vadd.xlane.f32.xlu0 %v2668
        %v2670 = vpop.xlane.xlu0 %2669
        %v2671 = vmul.f32 %v2667, %v450
        %v2672 = vmul.f32 %v2670, %v450
        %v2673 = vadd.f32 %v2671, 1e-05
        %v2674 = vadd.f32 %v2672, 1e-05
        %v2675 = vrsqrt.pop %v2673
        %v2676 = vrsqrt.pop %v2674
        %v2677 = vmul.f32 %v2661, %v2675
        %v2678 = vmul.f32 %v2662, %v2676
        %v2680 = vlaneseq
        %v2681 = vshrl.u32 %v2680, 7
        %v2682 = vsub.s32 0, %v2681
        %v2683 = vrot.slane %v2651, %v2682
        %v2685 = vmul.f32 %v2677, %v2683
        %v2686 = vmul.f32 %v2678, %v2683
        %v2688 = vlaneseq
        %v2689 = vshrl.u32 %v2688, 7
        %v2690 = vsub.s32 0, %v2689
        %v2691 = vrot.slane %v2652, %v2690
        %v2693 = vadd.f32 %v2685, %v2691
        %v2694 = vadd.f32 %v2686, %v2691
        %v2695 = vld [vmem:[%s9] sm:$0xff]
        %v2696 = vld [vmem:[%s9 + $0x8] sm:$0xff]
        %v2697 = vld [vmem:[%s9 + $0x10] sm:$0xff]
        %v2698 = vld [vmem:[%s9 + $0x18] sm:$0xff]
        %v2699 = vld [vmem:[%s10] sm:$0x1]
        %v2701 = vlaneseq
        %v2702 = vshrl.u32 %v2701, 7
        %v2703 = vsub.s32 0, %v2702
        %v2704 = vrot.slane %v2699, %v2703
        %v2707 = vsel %vm443, %v2693, 0
        %v2710 = vsel %vm443, %v2694, 0
        %2712 = vmatprep.subr.mxu0 0.0
        %2713 = vmatpush1.msra.mxu0 0.0
        %2714 = vmatprep.subr.mxu0 0.0
        %2715 = vmatpush1.msra.mxu0 0.0
        %2716 = vmatprep.subr.mxu0 0.0
        %2717 = vmatpush1.msra.mxu0 0.0
        %2718 = vmatprep.subr.mxu0 0.0
        %2719 = vmatpush1.msra.mxu0 0.0
        %2720 = vmatprep.subr.mxu0 0.0
        %2721 = vmatpush1.msra.mxu0 0.0
        %2722 = vmatprep.subr.mxu0 0.0
        %2723 = vmatpush1.msra.mxu0 0.0
        %2724 = vmatprep.subr.mxu0 0.0
        %2725 = vmatpush1.msra.mxu0 0.0
        %2726 = vmatprep.subr.mxu0 0.0
        %2727 = vmatpush1.msra.mxu0 0.0
        %2728 = vmatprep.subr.mxu0 0.0
        %2729 = vmatpush1.msra.mxu0 0.0
        %2730 = vmatprep.subr.mxu0 0.0
        %2731 = vmatpush1.msra.mxu0 0.0
        %2732 = vmatprep.subr.mxu0 0.0
        %2733 = vmatpush1.msra.mxu0 0.0
        %2734 = vmatprep.subr.mxu0 0.0
        %2735 = vmatpush1.msra.mxu0 0.0
        %2736 = vmatprep.subr.mxu0 0.0
        %2737 = vmatpush1.msra.mxu0 %v2698
        %2738 = vmatprep.subr.mxu0 0.0
        %2739 = vmatpush1.msra.mxu0 %v2697
        %2740 = vmatprep.subr.mxu0 0.0
        %2741 = vmatpush1.msra.mxu0 %v2696
        %2742 = vmatprep.subr.mxu0 0.0
        %2743 = vmatpush1.msra.mxu0 %v2695
        %2744 = vmatprep.subr.mxu0 0.0
        %2745 = vmatpush2.msra.mxu0 0.0
        %2746 = vmatprep.subr.mxu0 0.0
        %2747 = vmatpush2.msra.mxu0 0.0
        %2748 = vmatprep.subr.mxu0 0.0
        %2749 = vmatpush2.msra.mxu0 0.0
        %2750 = vmatprep.subr.mxu0 0.0
        %2751 = vmatpush2.msra.mxu0 0.0
        %2752 = vmatprep.subr.mxu0 0.0
        %2753 = vmatpush2.msra.mxu0 0.0
        %2754 = vmatprep.subr.mxu0 0.0
        %2755 = vmatpush2.msra.mxu0 0.0
        %2756 = vmatprep.subr.mxu0 0.0
        %2757 = vmatpush2.msra.mxu0 0.0
        %2758 = vmatprep.subr.mxu0 0.0
        %2759 = vmatpush2.msra.mxu0 0.0
        %2760 = vmatprep.subr.mxu0 0.0
        %2761 = vmatpush2.msra.mxu0 0.0
        %2762 = vmatprep.subr.mxu0 0.0
        %2763 = vmatpush2.msra.mxu0 0.0
        %2764 = vmatprep.subr.mxu0 0.0
        %2765 = vmatpush2.msra.mxu0 0.0
        %2766 = vmatprep.subr.mxu0 0.0
        %2767 = vmatpush2.msra.mxu0 0.0
        %2768 = vmatprep.subr.mxu0 0.0
        %2769 = vmatpush2.msra.mxu0 0.0
        %2770 = vmatprep.subr.mxu0 0.0
        %2771 = vmatpush2.msra.mxu0 0.0
        %2772 = vmatprep.subr.mxu0 0.0
        %2773 = vmatpush2.msra.mxu0 0.0
        %2774 = vmatprep.subr.mxu0 0.0
        %2775 = vmatpush2.msra.mxu0 0.0
        %2776 = vmatprep.mubr.f32.mxu0 0.0
        %2777 = vmatmul.mubr.f32.gmra.mxu0 %v2707
        %v2778 = vpop.f32.mrf.mxu0
        %v2779 = vadd.f32 %v2704, %v2778
        %v2780 = vpop.f32.mrf.mxu0
        %2781 = vmatprep.mubr.f32.mxu0 0.0
        %2782 = vmatmul.mubr.f32.gmra.mxu0 %v2710
        %v2783 = vpop.f32.mrf.mxu0
        %v2784 = vadd.f32 %v2704, %v2783
        %v2785 = vpop.f32.mrf.mxu0
        %2786 = vdwg.mxu0
        %v2787 = vmul.f32 %v2779, 0.5
        %v2788 = vmul.f32 %v2784, 0.5
        %v2789 = vmul.f32 %v2779, %v2779
        %v2790 = vmul.f32 %v2784, %v2784
        %v2791 = vmul.f32 %v2789, %v2779
        %v2792 = vmul.f32 %v2790, %v2784
        %v2793 = vmul.f32 %v2791, 0.044715
        %v2794 = vmul.f32 %v2792, 0.044715
        %v2795 = vadd.f32 %v2779, %v2793
        %v2796 = vadd.f32 %v2784, %v2794
        %v2797 = vmul.f32 %v2795, 0.7978846
        %v2798 = vmul.f32 %v2796, 0.7978846
        %v2799 = vtanh.pop %v2797
        %v2800 = vtanh.pop %v2798
        %v2801 = vadd.f32 %v2799, 1.0
        %v2802 = vadd.f32 %v2800, 1.0
        %v2803 = vmul.f32 %v2787, %v2801
        %v2804 = vmul.f32 %v2788, %v2802
        %v2805 = vld [vmem:[%s11] sm:$0xff]
        %v2806 = vld [vmem:[%s11 + $0x8] sm:$0xff]
        %v2807 = vld [vmem:[%s11 + $0x10] sm:$0xff]
        %v2808 = vld [vmem:[%s11 + $0x18] sm:$0xff]
        %v2809 = vld [vmem:[%s11 + $0x20] sm:$0xff]
        %v2810 = vld [vmem:[%s11 + $0x28] sm:$0xff]
        %v2811 = vld [vmem:[%s11 + $0x30] sm:$0xff]
        %v2812 = vld [vmem:[%s11 + $0x38] sm:$0xff]
        %v2813 = vld [vmem:[%s11 + $0x40] sm:$0xff]
        %v2814 = vld [vmem:[%s11 + $0x48] sm:$0xff]
        %v2815 = vld [vmem:[%s11 + $0x50] sm:$0xff]
        %v2816 = vld [vmem:[%s11 + $0x58] sm:$0xff]
        %v2817 = vld [vmem:[%s11 + $0x60] sm:$0xff]
        %v2818 = vld [vmem:[%s11 + $0x68] sm:$0xff]
        %v2819 = vld [vmem:[%s11 + $0x70] sm:$0xff]
        %v2820 = vld [vmem:[%s11 + $0x78] sm:$0xff]
        %v2821 = vld [vmem:[%s12] sm:$0x1]
        %v2823 = vlaneseq
        %v2824 = vshrl.u32 %v2823, 7
        %v2825 = vsub.s32 0, %v2824
        %v2826 = vrot.slane %v2821, %v2825
        %2828 = vmatprep.subr.mxu0 0.0
        %2829 = vmatpush1.msra.mxu0 %v2820
        %2830 = vmatprep.subr.mxu0 0.0
        %2831 = vmatpush1.msra.mxu0 %v2819
        %2832 = vmatprep.subr.mxu0 0.0
        %2833 = vmatpush1.msra.mxu0 %v2818
        %2834 = vmatprep.subr.mxu0 0.0
        %2835 = vmatpush1.msra.mxu0 %v2817
        %2836 = vmatprep.subr.mxu0 0.0
        %2837 = vmatpush1.msra.mxu0 %v2816
        %2838 = vmatprep.subr.mxu0 0.0
        %2839 = vmatpush1.msra.mxu0 %v2815
        %2840 = vmatprep.subr.mxu0 0.0
        %2841 = vmatpush1.msra.mxu0 %v2814
        %2842 = vmatprep.subr.mxu0 0.0
        %2843 = vmatpush1.msra.mxu0 %v2813
        %2844 = vmatprep.subr.mxu0 0.0
        %2845 = vmatpush1.msra.mxu0 %v2812
        %2846 = vmatprep.subr.mxu0 0.0
        %2847 = vmatpush1.msra.mxu0 %v2811
        %2848 = vmatprep.subr.mxu0 0.0
        %2849 = vmatpush1.msra.mxu0 %v2810
        %2850 = vmatprep.subr.mxu0 0.0
        %2851 = vmatpush1.msra.mxu0 %v2809
        %2852 = vmatprep.subr.mxu0 0.0
        %2853 = vmatpush1.msra.mxu0 %v2808
        %2854 = vmatprep.subr.mxu0 0.0
        %2855 = vmatpush1.msra.mxu0 %v2807
        %2856 = vmatprep.subr.mxu0 0.0
        %2857 = vmatpush1.msra.mxu0 %v2806
        %2858 = vmatprep.subr.mxu0 0.0
        %2859 = vmatpush1.msra.mxu0 %v2805
        %2860 = vmatprep.subr.mxu0 0.0
        %2861 = vmatpush2.msra.mxu0 0.0
        %2862 = vmatprep.subr.mxu0 0.0
        %2863 = vmatpush2.msra.mxu0 0.0
        %2864 = vmatprep.subr.mxu0 0.0
        %2865 = vmatpush2.msra.mxu0 0.0
        %2866 = vmatprep.subr.mxu0 0.0
        %2867 = vmatpush2.msra.mxu0 0.0
        %2868 = vmatprep.subr.mxu0 0.0
        %2869 = vmatpush2.msra.mxu0 0.0
        %2870 = vmatprep.subr.mxu0 0.0
        %2871 = vmatpush2.msra.mxu0 0.0
        %2872 = vmatprep.subr.mxu0 0.0
        %2873 = vmatpush2.msra.mxu0 0.0
        %2874 = vmatprep.subr.mxu0 0.0
        %2875 = vmatpush2.msra.mxu0 0.0
        %2876 = vmatprep.subr.mxu0 0.0
        %2877 = vmatpush2.msra.mxu0 0.0
        %2878 = vmatprep.subr.mxu0 0.0
        %2879 = vmatpush2.msra.mxu0 0.0
        %2880 = vmatprep.subr.mxu0 0.0
        %2881 = vmatpush2.msra.mxu0 0.0
        %2882 = vmatprep.subr.mxu0 0.0
        %2883 = vmatpush2.msra.mxu0 0.0
        %2884 = vmatprep.subr.mxu0 0.0
        %2885 = vmatpush2.msra.mxu0 0.0
        %2886 = vmatprep.subr.mxu0 0.0
        %2887 = vmatpush2.msra.mxu0 0.0
        %2888 = vmatprep.subr.mxu0 0.0
        %2889 = vmatpush2.msra.mxu0 0.0
        %2890 = vmatprep.subr.mxu0 0.0
        %2891 = vmatpush2.msra.mxu0 0.0
        %2892 = vmatprep.mubr.f32.mxu0 0.0
        %2893 = vmatmul.mubr.f32.gmra.mxu0 %v2803
        %v2894 = vpop.f32.mrf.mxu0
        %v2895 = vadd.f32 %v2826, %v2894
        %v2896 = vpop.f32.mrf.mxu0
        %2897 = vmatprep.mubr.f32.mxu0 0.0
        %2898 = vmatmul.mubr.f32.gmra.mxu0 %v2804
        %v2899 = vpop.f32.mrf.mxu0
        %v2900 = vadd.f32 %v2826, %v2899
        %v2901 = vpop.f32.mrf.mxu0
        %2902 = vdwg.mxu0
        %v2903 = vadd.f32 %v2649, %v2895
        %v2904 = vadd.f32 %v2650, %v2900
        %2905 = vst.msk [vmem:[%s433] sm:$0xff] %vm443, %v2903
        %2906 = vst.msk [vmem:[%s433 + $0x8] sm:$0xff] %vm443, %v2904
        %s2907 = sand.u32 %s313, 1
        %s2908 = scalar_lea.sflag [#allocation3], %s2907
        %s2909 = sand.u32 %s313, 1
        %s2910 = smul.addr %s2909, 16
        %s2911 = scalar_lea.vmem [#allocation2], %s2910
        // Predicated region
        $region73: #{tpu_custom_call.1} parent=71 // pred_check
          %p2912 = pneg %p323
        $region74: #{tpu_custom_call.1} parent=71 // pred_check_branch
          %2914 = sbr.rel (%p2912) target = $region76
        $region75: #{tpu_custom_call.1} parent=71 // pred_region
          %s2916 = ssub.s32 256, 256
          %2917 = vsyncadd %s2908, %s2916
          %s2918 = smul.addr %s27, 2
          %s2919 = smul.addr %s2918, 128
          %s2920 = scalar_lea.hbm %s13, %s2919
          %s2921 = sshll.u32 %s2911, 4
          %s2922 = int_to_ptr.vmem [resolvable:$true] %s2921
          %2927 = dma.vmem_to_hbm [thread:$0]  %s2922, 256, %s2920, %s2908, 128, 128, 8
        $region76: #{tpu_custom_call.1} parent=71 // pred_fallthru
          _
      $region72: #{tpu_custom_call.1} parent=5 // pred_fallthru
        _
      %p2928 = scmp.le.s32.totalorder 2, %s22
      // Predicated region
      $region77: #{tpu_custom_call.1} parent=5 // pred_check
        %p2929 = pneg %p2928
      $region78: #{tpu_custom_call.1} parent=5 // pred_check_branch
        %2931 = sbr.rel (%p2929) target = $region80
      $region79: #{tpu_custom_call.1} parent=5 // pred_region
        %s2932 = ssub.s32 %s22, 2
        // Predicated region
        $region81: #{tpu_custom_call.1} parent=79 // pred_check
          %p2933 = pneg %p329
        $region82: #{tpu_custom_call.1} parent=79 // pred_check_branch
          %2935 = sbr.rel (%p2933) target = $region84
        $region83: #{tpu_custom_call.1} parent=79 // pred_region
          %s2936 = sand.u32 %s314, 1
          %s2937 = scalar_lea.sflag [#allocation3], %s2936
          %s2938 = sand.u32 %s314, 1
          %s2939 = smul.addr %s2938, 16
          %s2940 = scalar_lea.vmem [#allocation2], %s2939
          %2941 = dma.done %s2937, 256
        $region84: #{tpu_custom_call.1} parent=79 // pred_fallthru
          _
      $region80: #{tpu_custom_call.1} parent=5 // pred_fallthru
        _
    $region6: #{tpu_custom_call.1} parent=1 // loop_footer
      %s26 = sadd.s32 1, %s22
    $region7: #{tpu_custom_call.1} parent=1 // loop_footer_branch
      %21 = sbr.rel target = $region3
    $region8: #{tpu_custom_call.1} parent=1 // loop_exit
      _
    %2942 = vsyncpa [#allocation3], 1
    %s2943 = scalar_lea.sflag [#allocation3], 1
    %2944 = vsyncpa %s2943, 1

</llo_original>
